<compile_context>
chip_gen: v7x
topology: tpu7x:2x2x1
jax: 0.10.0
libtpu: 0.0.40
codegen_flags: <defaults>
</compile_context>

<pallas_src>
import math
import functools

import jax
import jax.numpy as jnp
from jax.experimental import pallas as pl
from jax.experimental.pallas import tpu as pltpu


def bert_attention_kernel(
    xq_ref, xf_ref, mask_ref,
    wq_ref, bq_ref, wkv_ref, bkv_ref,
    wo_ref, bo_ref, gamma_ref, beta_ref,
    out_ref,
    *, num_heads, head_size, ln_eps,
):
    xq = xq_ref[0]                              # (TQ, H)  query tile (also residual input)
    xf = xf_ref[0]                              # (S,  H)  full sequence (for K/V)
    tq, hidden = xq.shape
    s_len = xf.shape[0]

    xq_b = xq.astype(jnp.bfloat16)
    xf_b = xf.astype(jnp.bfloat16)

    # --- projections: bf16 operands, f32 accumulation, weights already [in, out] ---
    q = jnp.dot(xq_b, wq_ref[...], preferred_element_type=jnp.float32) + bq_ref[0]
    q = q * (1.0 / math.sqrt(head_size))        # fold 1/sqrt(hd) once, outside head loop
    kv = jnp.dot(xf_b, wkv_ref[...], preferred_element_type=jnp.float32) + bkv_ref[0]
    k = kv[:, :hidden]
    v = kv[:, hidden:]

    # additive attention mask (B,1,1,S), broadcast over heads / query rows; hoisted
    # out of the per-head loop so the broadcast is materialized once.
    # TODO(synk): general (B,1,Sq,S) or per-head masks not supported; standard BERT (B,1,1,S) only.
    mask2d = jnp.broadcast_to(
        mask_ref[0, 0, 0, :].astype(jnp.float32)[None, :], (tq, s_len))

    # --- per-head attention: 2-D lane-dense matmuls, no (nh,S,S) materialization ---
    ctx_heads = []
    for h in range(num_heads):
        sl = slice(h * head_size, (h + 1) * head_size)
        qh = q[:, sl].astype(jnp.bfloat16)      # (TQ, hd)
        kh = k[:, sl].astype(jnp.bfloat16)      # (S,  hd)
        vh = v[:, sl].astype(jnp.bfloat16)      # (S,  hd)
        # scores = qh @ kh^T without transposing kh (contract the head dim of both)
        s = jax.lax.dot_general(qh, kh, (((1,), (1,)), ((), ())),
                                preferred_element_type=jnp.float32)
        s = s + mask2d
        m = jnp.max(s, axis=-1, keepdims=True)
        e = jnp.exp(s - m)
        p = e * pl.reciprocal(jnp.sum(e, axis=-1, keepdims=True), approx=True)
        # TODO(synk): attention_probs dropout omitted (inference semantics)
        ctx_heads.append(jnp.dot(p.astype(jnp.bfloat16), vh,
                                 preferred_element_type=jnp.float32))
    ctx = jnp.concatenate(ctx_heads, axis=-1)   # (TQ, H) f32

    # --- BertSelfOutput: dense + residual + LayerNorm (f32 math) ---
    o = jnp.dot(ctx.astype(jnp.bfloat16), wo_ref[...],
                preferred_element_type=jnp.float32) + bo_ref[0]
    # TODO(synk): hidden_dropout omitted (inference semantics)
    hres = o + xq.astype(jnp.float32)
    mu = jnp.mean(hres, axis=-1, keepdims=True)
    var = jnp.mean((hres - mu) ** 2, axis=-1, keepdims=True)
    y = (hres - mu) * jax.lax.rsqrt(var + ln_eps)
    y = y * gamma_ref[0] + beta_ref[0]
    out_ref[0] = y.astype(out_ref.dtype)


def bert_attention(x, attention_mask, params, *, num_heads, ln_eps=1e-12, q_tile=None):
    B, S, H = x.shape
    assert H % num_heads == 0
    head_size = H // num_heads
    assert attention_mask.shape == (B, 1, 1, S), "expect standard BERT additive mask (B,1,1,S)"

    # query-tile size: full sequence for small S, 256-row tiles for large S
    if q_tile is None:
        q_tile = 256 if (S > 256 and S % 256 == 0) else S
    assert S % q_tile == 0
    n_q_tiles = S // q_tile

    wq, bq, wk, bk, wv, bv, wo, bo, gamma, beta = params
    # Pre-transpose to [in, out] and cast matmul operands to bf16 (MXU-native);
    # fuse K/V weights so the full-sequence projection is a single MXU pass.
    wq_t = wq.T.astype(jnp.bfloat16)                                        # (H, H)
    wkv_t = jnp.concatenate([wk, wv], axis=0).T.astype(jnp.bfloat16)        # (H, 2H)
    bkv = jnp.concatenate([bk, bv], axis=-1).astype(jnp.float32)            # (1, 2H)
    wo_t = wo.T.astype(jnp.bfloat16)                                        # (H, H)
    bq32 = bq.astype(jnp.float32)
    bo32 = bo.astype(jnp.float32)
    g32 = gamma.astype(jnp.float32)
    beta32 = beta.astype(jnp.float32)

    # Whole-array VMEM residency: single buffer, no per-grid-step re-DMA.
    vmem_resident = pl.BlockSpec(memory_space=pltpu.MemorySpace.VMEM)

    kernel = functools.partial(
        bert_attention_kernel,
        num_heads=num_heads, head_size=head_size, ln_eps=ln_eps,
    )
    return pl.pallas_call(
        kernel,
        out_shape=jax.ShapeDtypeStruct((B, S, H), x.dtype),
        grid_spec=pltpu.PrefetchScalarGridSpec(
            num_scalar_prefetch=0,
            grid=(B, n_q_tiles),
            in_specs=[
                pl.BlockSpec((1, q_tile, H), lambda b, qi: (b, qi, 0)),    # x (query tile)
                pl.BlockSpec((1, S, H), lambda b, qi: (b, 0, 0)),          # x (full seq, K/V)
                pl.BlockSpec((1, 1, 1, S), lambda b, qi: (b, 0, 0, 0)),    # attention mask
                vmem_resident, vmem_resident,   # Wq^T (bf16), bq
                vmem_resident, vmem_resident,   # Wkv^T (bf16), bkv
                vmem_resident, vmem_resident,   # Wo^T (bf16), bo
                vmem_resident, vmem_resident,   # gamma, beta
            ],
            out_specs=pl.BlockSpec((1, q_tile, H), lambda b, qi: (b, qi, 0)),
        ),
        compiler_params=pltpu.CompilerParams(
            dimension_semantics=("parallel", "parallel"),
            vmem_limit_bytes=48 * 1024 * 1024,
        ),
    )(x, x, attention_mask, wq_t, bq32, wkv_t, bkv, wo_t, bo32, g32, beta32)


def reference(x, mask, params, num_heads, ln_eps=1e-12):
    wq, bq, wk, bk, wv, bv, wo, bo, g, beta = params
    B, S, H = x.shape
    hd = H // num_heads
    q = (x @ wq.T + bq[0]).reshape(B, S, num_heads, hd).transpose(0, 2, 1, 3)
    k = (x @ wk.T + bk[0]).reshape(B, S, num_heads, hd).transpose(0, 2, 1, 3)
    v = (x @ wv.T + bv[0]).reshape(B, S, num_heads, hd).transpose(0, 2, 1, 3)
    scores = jnp.einsum("bhqd,bhkd->bhqk", q, k) / math.sqrt(hd)
    scores = scores + mask
    probs = jax.nn.softmax(scores, axis=-1)
    ctx = jnp.einsum("bhqk,bhkd->bhqd", probs, v).transpose(0, 2, 1, 3).reshape(B, S, H)
    h = ctx @ wo.T + bo[0] + x
    mu = h.mean(-1, keepdims=True)
    var = ((h - mu) ** 2).mean(-1, keepdims=True)
    return (h - mu) / jnp.sqrt(var + ln_eps) * g[0] + beta[0]


if __name__ == "__main__":
    B, S, H, NH = 2, 8, 32, 4

    key = jax.random.PRNGKey(0)
    keys = jax.random.split(key, 12)
    scale = 1.0 / math.sqrt(H)
    wq = jax.random.uniform(keys[0], (H, H), jnp.float32, -scale, scale)
    bq = jax.random.uniform(keys[1], (1, H), jnp.float32, -scale, scale)
    wk = jax.random.uniform(keys[2], (H, H), jnp.float32, -scale, scale)
    bk = jax.random.uniform(keys[3], (1, H), jnp.float32, -scale, scale)
    wv = jax.random.uniform(keys[4], (H, H), jnp.float32, -scale, scale)
    bv = jax.random.uniform(keys[5], (1, H), jnp.float32, -scale, scale)
    wo = jax.random.uniform(keys[6], (H, H), jnp.float32, -scale, scale)
    bo = jax.random.uniform(keys[7], (1, H), jnp.float32, -scale, scale)
    gamma = jnp.ones((1, H), jnp.float32)
    beta = jnp.zeros((1, H), jnp.float32)
    params = (wq, bq, wk, bk, wv, bv, wo, bo, gamma, beta)

    x = jax.random.normal(keys[8], (B, S, H), jnp.float32)
    # standard BERT additive mask: 0 for keep, -10000 for masked positions
    keep = (jnp.arange(S) < S - 2).astype(jnp.float32)
    attention_mask = ((1.0 - keep) * -10000.0).reshape(1, 1, 1, S)
    attention_mask = jnp.broadcast_to(attention_mask, (B, 1, 1, S))

    out = bert_attention(x, attention_mask, params, num_heads=NH)
    out = jax.block_until_ready(out)

    ref = reference(x, attention_mask, params, NH)
    # tolerance loosened vs f32-only version: matmul operands are bf16 (MXU-native),
    # accumulation and softmax/LayerNorm remain f32.
    assert jnp.allclose(out, ref, atol=3e-2, rtol=3e-2), (
        f"max err {jnp.max(jnp.abs(out - ref))}"
    )
    print("KERNEL_OK")
</pallas_src>

<mosaic_0001>
module attributes {stable_mosaic.version = 11 : i64} {
  func.func @bert_attention_kernel(%arg0: i32, %arg1: i32, %arg2: memref<1x8x32xf32, #tpu.memory_space<vmem>>, %arg3: memref<1x8x32xf32, #tpu.memory_space<vmem>>, %arg4: memref<1x1x1x8xf32, #tpu.memory_space<vmem>>, %arg5: memref<32x32xbf16, #tpu.memory_space<vmem>>, %arg6: memref<1x32xf32, #tpu.memory_space<vmem>>, %arg7: memref<32x64xbf16, #tpu.memory_space<vmem>>, %arg8: memref<1x64xf32, #tpu.memory_space<vmem>>, %arg9: memref<32x32xbf16, #tpu.memory_space<vmem>>, %arg10: memref<1x32xf32, #tpu.memory_space<vmem>>, %arg11: memref<1x32xf32, #tpu.memory_space<vmem>>, %arg12: memref<1x32xf32, #tpu.memory_space<vmem>>, %arg13: memref<1x8x32xf32, #tpu.memory_space<vmem>>) attributes {dimension_semantics = [#tpu.dimension_semantics<parallel>, #tpu.dimension_semantics<parallel>], iteration_bounds = array<i64: 2, 1>, scalar_prefetch = 0 : i64, scratch_operands = 0 : i64, tpu.core_type = #tpu.core_type<tc>, window_params = [{transform_indices = @transform_0, window_bounds = array<i64: 1, 8, 32>}, {transform_indices = @transform_1, window_bounds = array<i64: 1, 8, 32>}, {transform_indices = @transform_2, window_bounds = array<i64: 1, 1, 1, 8>}, {pipeline_mode = #tpu.pipeline_mode<synchronous>, transform_indices = @transform_3, window_bounds = array<i64: 32, 32>}, {pipeline_mode = #tpu.pipeline_mode<synchronous>, transform_indices = @transform_4, window_bounds = array<i64: 1, 32>}, {pipeline_mode = #tpu.pipeline_mode<synchronous>, transform_indices = @transform_5, window_bounds = array<i64: 32, 64>}, {pipeline_mode = #tpu.pipeline_mode<synchronous>, transform_indices = @transform_6, window_bounds = array<i64: 1, 64>}, {pipeline_mode = #tpu.pipeline_mode<synchronous>, transform_indices = @transform_7, window_bounds = array<i64: 32, 32>}, {pipeline_mode = #tpu.pipeline_mode<synchronous>, transform_indices = @transform_8, window_bounds = array<i64: 1, 32>}, {pipeline_mode = #tpu.pipeline_mode<synchronous>, transform_indices = @transform_9, window_bounds = array<i64: 1, 32>}, {pipeline_mode = #tpu.pipeline_mode<synchronous>, transform_indices = @transform_10, window_bounds = array<i64: 1, 32>}, {transform_indices = @transform_11, window_bounds = array<i64: 1, 8, 32>}]} {
    %c0 = arith.constant 0 : index
    %c0_0 = arith.constant 0 : index
    %c0_1 = arith.constant 0 : index
    %0 = vector.load %arg2[%c0, %c0_0, %c0_1] : memref<1x8x32xf32, #tpu.memory_space<vmem>>, vector<1x8x32xf32>
    %1 = vector.shape_cast %0 : vector<1x8x32xf32> to vector<8x32xf32>
    %c0_2 = arith.constant 0 : index
    %c0_3 = arith.constant 0 : index
    %c0_4 = arith.constant 0 : index
    %2 = vector.load %arg3[%c0_2, %c0_3, %c0_4] : memref<1x8x32xf32, #tpu.memory_space<vmem>>, vector<1x8x32xf32>
    %3 = vector.shape_cast %2 : vector<1x8x32xf32> to vector<8x32xf32>
    %4 = arith.truncf %1 : vector<8x32xf32> to vector<8x32xbf16>
    %5 = arith.truncf %3 : vector<8x32xf32> to vector<8x32xbf16>
    %c0_5 = arith.constant 0 : index
    %c0_6 = arith.constant 0 : index
    %6 = vector.load %arg5[%c0_5, %c0_6] : memref<32x32xbf16, #tpu.memory_space<vmem>>, vector<32x32xbf16>
    %cst = arith.constant dense<0.000000e+00> : vector<8x32xf32>
    %7 = tpu.matmul %4, %6, %cst {dimension_numbers = #tpu.dot_dimension_numbers<[1], [0], [0], [1], [0, 0, 1, 1], [], []>} : vector<8x32xbf16>, vector<32x32xbf16>, vector<8x32xf32> -> vector<8x32xf32>
    %c0_7 = arith.constant 0 : index
    %c0_8 = arith.constant 0 : index
    %8 = vector.load %arg6[%c0_7, %c0_8] : memref<1x32xf32, #tpu.memory_space<vmem>>, vector<1x32xf32>
    %9 = vector.shape_cast %8 : vector<1x32xf32> to vector<32xf32>
    %10 = vector.shape_cast %9 : vector<32xf32> to vector<1x32xf32>
    %11 = vector.broadcast %10 : vector<1x32xf32> to vector<8x32xf32>
    %12 = arith.addf %7, %11 : vector<8x32xf32>
    %cst_9 = arith.constant 0.353553385 : f32
    %13 = vector.broadcast %cst_9 : f32 to vector<8x32xf32>
    %14 = arith.mulf %12, %13 : vector<8x32xf32>
    %c0_10 = arith.constant 0 : index
    %c0_11 = arith.constant 0 : index
    %15 = vector.load %arg7[%c0_10, %c0_11] : memref<32x64xbf16, #tpu.memory_space<vmem>>, vector<32x64xbf16>
    %cst_12 = arith.constant dense<0.000000e+00> : vector<8x64xf32>
    %16 = tpu.matmul %5, %15, %cst_12 {dimension_numbers = #tpu.dot_dimension_numbers<[1], [0], [0], [1], [0, 0, 1, 1], [], []>} : vector<8x32xbf16>, vector<32x64xbf16>, vector<8x64xf32> -> vector<8x64xf32>
    %c0_13 = arith.constant 0 : index
    %c0_14 = arith.constant 0 : index
    %17 = vector.load %arg8[%c0_13, %c0_14] : memref<1x64xf32, #tpu.memory_space<vmem>>, vector<1x64xf32>
    %18 = vector.shape_cast %17 : vector<1x64xf32> to vector<64xf32>
    %19 = vector.shape_cast %18 : vector<64xf32> to vector<1x64xf32>
    %20 = vector.broadcast %19 : vector<1x64xf32> to vector<8x64xf32>
    %21 = arith.addf %16, %20 : vector<8x64xf32>
    %22 = vector.extract_strided_slice %21 {offsets = [0, 0], sizes = [8, 32], strides = [1, 1]} : vector<8x64xf32> to vector<8x32xf32>
    %23 = vector.extract_strided_slice %21 {offsets = [0, 32], sizes = [8, 32], strides = [1, 1]} : vector<8x64xf32> to vector<8x32xf32>
    %c0_15 = arith.constant 0 : index
    %c0_16 = arith.constant 0 : index
    %c0_17 = arith.constant 0 : index
    %c0_18 = arith.constant 0 : index
    %24 = vector.load %arg4[%c0_15, %c0_16, %c0_17, %c0_18] : memref<1x1x1x8xf32, #tpu.memory_space<vmem>>, vector<1x1x1x8xf32>
    %25 = vector.shape_cast %24 : vector<1x1x1x8xf32> to vector<8xf32>
    %26 = vector.shape_cast %25 : vector<8xf32> to vector<1x8xf32>
    %27 = vector.shape_cast %26 : vector<1x8xf32> to vector<1x8xf32>
    %28 = vector.broadcast %27 : vector<1x8xf32> to vector<8x8xf32>
    %29 = vector.extract_strided_slice %14 {offsets = [0, 0], sizes = [8, 8], strides = [1, 1]} : vector<8x32xf32> to vector<8x8xf32>
    %30 = arith.truncf %29 : vector<8x8xf32> to vector<8x8xbf16>
    %31 = vector.extract_strided_slice %22 {offsets = [0, 0], sizes = [8, 8], strides = [1, 1]} : vector<8x32xf32> to vector<8x8xf32>
    %32 = arith.truncf %31 : vector<8x8xf32> to vector<8x8xbf16>
    %33 = vector.extract_strided_slice %23 {offsets = [0, 0], sizes = [8, 8], strides = [1, 1]} : vector<8x32xf32> to vector<8x8xf32>
    %34 = arith.truncf %33 : vector<8x8xf32> to vector<8x8xbf16>
    %cst_19 = arith.constant dense<0.000000e+00> : vector<8x8xf32>
    %35 = tpu.matmul %30, %32, %cst_19 {dimension_numbers = #tpu.dot_dimension_numbers<[1], [1], [0], [0], [0, 0, 1, 0], [], []>} : vector<8x8xbf16>, vector<8x8xbf16>, vector<8x8xf32> -> vector<8x8xf32>
    %36 = arith.addf %35, %28 : vector<8x8xf32>
    %cst_20 = arith.constant dense<0xFF800000> : vector<8xf32>
    %37 = vector.multi_reduction <maximumf>, %36, %cst_20 [1] : vector<8x8xf32> to vector<8xf32>
    %38 = vector.shape_cast %37 : vector<8xf32> to vector<8x1xf32>
    %39 = vector.broadcast %38 : vector<8x1xf32> to vector<8x8xf32>
    %40 = arith.subf %36, %39 : vector<8x8xf32>
    %41 = math.exp %40 : vector<8x8xf32>
    %cst_21 = arith.constant dense<0.000000e+00> : vector<8xf32>
    %42 = vector.multi_reduction <add>, %41, %cst_21 [1] : vector<8x8xf32> to vector<8xf32>
    %43 = vector.shape_cast %42 : vector<8xf32> to vector<8x1xf32>
    %44 = tpu.reciprocal %43 {approx = true} : vector<8x1xf32> -> vector<8x1xf32>
    %45 = vector.broadcast %44 : vector<8x1xf32> to vector<8x8xf32>
    %46 = arith.mulf %41, %45 : vector<8x8xf32>
    %47 = arith.truncf %46 : vector<8x8xf32> to vector<8x8xbf16>
    %cst_22 = arith.constant dense<0.000000e+00> : vector<8x8xf32>
    %48 = tpu.matmul %47, %34, %cst_22 {dimension_numbers = #tpu.dot_dimension_numbers<[1], [0], [0], [1], [0, 0, 1, 1], [], []>} : vector<8x8xbf16>, vector<8x8xbf16>, vector<8x8xf32> -> vector<8x8xf32>
    %49 = vector.extract_strided_slice %14 {offsets = [0, 8], sizes = [8, 8], strides = [1, 1]} : vector<8x32xf32> to vector<8x8xf32>
    %50 = arith.truncf %49 : vector<8x8xf32> to vector<8x8xbf16>
    %51 = vector.extract_strided_slice %22 {offsets = [0, 8], sizes = [8, 8], strides = [1, 1]} : vector<8x32xf32> to vector<8x8xf32>
    %52 = arith.truncf %51 : vector<8x8xf32> to vector<8x8xbf16>
    %53 = vector.extract_strided_slice %23 {offsets = [0, 8], sizes = [8, 8], strides = [1, 1]} : vector<8x32xf32> to vector<8x8xf32>
    %54 = arith.truncf %53 : vector<8x8xf32> to vector<8x8xbf16>
    %cst_23 = arith.constant dense<0.000000e+00> : vector<8x8xf32>
    %55 = tpu.matmul %50, %52, %cst_23 {dimension_numbers = #tpu.dot_dimension_numbers<[1], [1], [0], [0], [0, 0, 1, 0], [], []>} : vector<8x8xbf16>, vector<8x8xbf16>, vector<8x8xf32> -> vector<8x8xf32>
    %56 = arith.addf %55, %28 : vector<8x8xf32>
    %cst_24 = arith.constant dense<0xFF800000> : vector<8xf32>
    %57 = vector.multi_reduction <maximumf>, %56, %cst_24 [1] : vector<8x8xf32> to vector<8xf32>
    %58 = vector.shape_cast %57 : vector<8xf32> to vector<8x1xf32>
    %59 = vector.broadcast %58 : vector<8x1xf32> to vector<8x8xf32>
    %60 = arith.subf %56, %59 : vector<8x8xf32>
    %61 = math.exp %60 : vector<8x8xf32>
    %cst_25 = arith.constant dense<0.000000e+00> : vector<8xf32>
    %62 = vector.multi_reduction <add>, %61, %cst_25 [1] : vector<8x8xf32> to vector<8xf32>
    %63 = vector.shape_cast %62 : vector<8xf32> to vector<8x1xf32>
    %64 = tpu.reciprocal %63 {approx = true} : vector<8x1xf32> -> vector<8x1xf32>
    %65 = vector.broadcast %64 : vector<8x1xf32> to vector<8x8xf32>
    %66 = arith.mulf %61, %65 : vector<8x8xf32>
    %67 = arith.truncf %66 : vector<8x8xf32> to vector<8x8xbf16>
    %cst_26 = arith.constant dense<0.000000e+00> : vector<8x8xf32>
    %68 = tpu.matmul %67, %54, %cst_26 {dimension_numbers = #tpu.dot_dimension_numbers<[1], [0], [0], [1], [0, 0, 1, 1], [], []>} : vector<8x8xbf16>, vector<8x8xbf16>, vector<8x8xf32> -> vector<8x8xf32>
    %69 = vector.extract_strided_slice %14 {offsets = [0, 16], sizes = [8, 8], strides = [1, 1]} : vector<8x32xf32> to vector<8x8xf32>
    %70 = arith.truncf %69 : vector<8x8xf32> to vector<8x8xbf16>
    %71 = vector.extract_strided_slice %22 {offsets = [0, 16], sizes = [8, 8], strides = [1, 1]} : vector<8x32xf32> to vector<8x8xf32>
    %72 = arith.truncf %71 : vector<8x8xf32> to vector<8x8xbf16>
    %73 = vector.extract_strided_slice %23 {offsets = [0, 16], sizes = [8, 8], strides = [1, 1]} : vector<8x32xf32> to vector<8x8xf32>
    %74 = arith.truncf %73 : vector<8x8xf32> to vector<8x8xbf16>
    %cst_27 = arith.constant dense<0.000000e+00> : vector<8x8xf32>
    %75 = tpu.matmul %70, %72, %cst_27 {dimension_numbers = #tpu.dot_dimension_numbers<[1], [1], [0], [0], [0, 0, 1, 0], [], []>} : vector<8x8xbf16>, vector<8x8xbf16>, vector<8x8xf32> -> vector<8x8xf32>
    %76 = arith.addf %75, %28 : vector<8x8xf32>
    %cst_28 = arith.constant dense<0xFF800000> : vector<8xf32>
    %77 = vector.multi_reduction <maximumf>, %76, %cst_28 [1] : vector<8x8xf32> to vector<8xf32>
    %78 = vector.shape_cast %77 : vector<8xf32> to vector<8x1xf32>
    %79 = vector.broadcast %78 : vector<8x1xf32> to vector<8x8xf32>
    %80 = arith.subf %76, %79 : vector<8x8xf32>
    %81 = math.exp %80 : vector<8x8xf32>
    %cst_29 = arith.constant dense<0.000000e+00> : vector<8xf32>
    %82 = vector.multi_reduction <add>, %81, %cst_29 [1] : vector<8x8xf32> to vector<8xf32>
    %83 = vector.shape_cast %82 : vector<8xf32> to vector<8x1xf32>
    %84 = tpu.reciprocal %83 {approx = true} : vector<8x1xf32> -> vector<8x1xf32>
    %85 = vector.broadcast %84 : vector<8x1xf32> to vector<8x8xf32>
    %86 = arith.mulf %81, %85 : vector<8x8xf32>
    %87 = arith.truncf %86 : vector<8x8xf32> to vector<8x8xbf16>
    %cst_30 = arith.constant dense<0.000000e+00> : vector<8x8xf32>
    %88 = tpu.matmul %87, %74, %cst_30 {dimension_numbers = #tpu.dot_dimension_numbers<[1], [0], [0], [1], [0, 0, 1, 1], [], []>} : vector<8x8xbf16>, vector<8x8xbf16>, vector<8x8xf32> -> vector<8x8xf32>
    %89 = vector.extract_strided_slice %14 {offsets = [0, 24], sizes = [8, 8], strides = [1, 1]} : vector<8x32xf32> to vector<8x8xf32>
    %90 = arith.truncf %89 : vector<8x8xf32> to vector<8x8xbf16>
    %91 = vector.extract_strided_slice %22 {offsets = [0, 24], sizes = [8, 8], strides = [1, 1]} : vector<8x32xf32> to vector<8x8xf32>
    %92 = arith.truncf %91 : vector<8x8xf32> to vector<8x8xbf16>
    %93 = vector.extract_strided_slice %23 {offsets = [0, 24], sizes = [8, 8], strides = [1, 1]} : vector<8x32xf32> to vector<8x8xf32>
    %94 = arith.truncf %93 : vector<8x8xf32> to vector<8x8xbf16>
    %cst_31 = arith.constant dense<0.000000e+00> : vector<8x8xf32>
    %95 = tpu.matmul %90, %92, %cst_31 {dimension_numbers = #tpu.dot_dimension_numbers<[1], [1], [0], [0], [0, 0, 1, 0], [], []>} : vector<8x8xbf16>, vector<8x8xbf16>, vector<8x8xf32> -> vector<8x8xf32>
    %96 = arith.addf %95, %28 : vector<8x8xf32>
    %cst_32 = arith.constant dense<0xFF800000> : vector<8xf32>
    %97 = vector.multi_reduction <maximumf>, %96, %cst_32 [1] : vector<8x8xf32> to vector<8xf32>
    %98 = vector.shape_cast %97 : vector<8xf32> to vector<8x1xf32>
    %99 = vector.broadcast %98 : vector<8x1xf32> to vector<8x8xf32>
    %100 = arith.subf %96, %99 : vector<8x8xf32>
    %101 = math.exp %100 : vector<8x8xf32>
    %cst_33 = arith.constant dense<0.000000e+00> : vector<8xf32>
    %102 = vector.multi_reduction <add>, %101, %cst_33 [1] : vector<8x8xf32> to vector<8xf32>
    %103 = vector.shape_cast %102 : vector<8xf32> to vector<8x1xf32>
    %104 = tpu.reciprocal %103 {approx = true} : vector<8x1xf32> -> vector<8x1xf32>
    %105 = vector.broadcast %104 : vector<8x1xf32> to vector<8x8xf32>
    %106 = arith.mulf %101, %105 : vector<8x8xf32>
    %107 = arith.truncf %106 : vector<8x8xf32> to vector<8x8xbf16>
    %cst_34 = arith.constant dense<0.000000e+00> : vector<8x8xf32>
    %108 = tpu.matmul %107, %94, %cst_34 {dimension_numbers = #tpu.dot_dimension_numbers<[1], [0], [0], [1], [0, 0, 1, 1], [], []>} : vector<8x8xbf16>, vector<8x8xbf16>, vector<8x8xf32> -> vector<8x8xf32>
    %109 = tpu.concatenate %48, %68, %88, %108 in 1 : vector<8x8xf32>, vector<8x8xf32>, vector<8x8xf32>, vector<8x8xf32> -> vector<8x32xf32>
    %110 = arith.truncf %109 : vector<8x32xf32> to vector<8x32xbf16>
    %c0_35 = arith.constant 0 : index
    %c0_36 = arith.constant 0 : index
    %111 = vector.load %arg9[%c0_35, %c0_36] : memref<32x32xbf16, #tpu.memory_space<vmem>>, vector<32x32xbf16>
    %cst_37 = arith.constant dense<0.000000e+00> : vector<8x32xf32>
    %112 = tpu.matmul %110, %111, %cst_37 {dimension_numbers = #tpu.dot_dimension_numbers<[1], [0], [0], [1], [0, 0, 1, 1], [], []>} : vector<8x32xbf16>, vector<32x32xbf16>, vector<8x32xf32> -> vector<8x32xf32>
    %c0_38 = arith.constant 0 : index
    %c0_39 = arith.constant 0 : index
    %113 = vector.load %arg10[%c0_38, %c0_39] : memref<1x32xf32, #tpu.memory_space<vmem>>, vector<1x32xf32>
    %114 = vector.shape_cast %113 : vector<1x32xf32> to vector<32xf32>
    %115 = vector.shape_cast %114 : vector<32xf32> to vector<1x32xf32>
    %116 = vector.broadcast %115 : vector<1x32xf32> to vector<8x32xf32>
    %117 = arith.addf %112, %116 : vector<8x32xf32>
    %118 = arith.addf %117, %1 : vector<8x32xf32>
    %cst_40 = arith.constant dense<0.000000e+00> : vector<8xf32>
    %119 = vector.multi_reduction <add>, %118, %cst_40 [1] : vector<8x32xf32> to vector<8xf32>
    %120 = vector.shape_cast %119 : vector<8xf32> to vector<8x1xf32>
    %cst_41 = arith.constant 3.200000e+01 : f32
    %121 = vector.broadcast %cst_41 : f32 to vector<8x1xf32>
    %122 = arith.divf %120, %121 : vector<8x1xf32>
    %123 = vector.broadcast %122 : vector<8x1xf32> to vector<8x32xf32>
    %124 = arith.subf %118, %123 : vector<8x32xf32>
    %125 = arith.mulf %124, %124 : vector<8x32xf32>
    %cst_42 = arith.constant dense<0.000000e+00> : vector<8xf32>
    %126 = vector.multi_reduction <add>, %125, %cst_42 [1] : vector<8x32xf32> to vector<8xf32>
    %127 = vector.shape_cast %126 : vector<8xf32> to vector<8x1xf32>
    %cst_43 = arith.constant 3.200000e+01 : f32
    %128 = vector.broadcast %cst_43 : f32 to vector<8x1xf32>
    %129 = arith.divf %127, %128 : vector<8x1xf32>
    %130 = vector.broadcast %122 : vector<8x1xf32> to vector<8x32xf32>
    %131 = arith.subf %118, %130 : vector<8x32xf32>
    %cst_44 = arith.constant 9.99999996E-13 : f32
    %132 = vector.broadcast %cst_44 : f32 to vector<8x1xf32>
    %133 = arith.addf %129, %132 : vector<8x1xf32>
    %134 = math.rsqrt %133 : vector<8x1xf32>
    %135 = vector.broadcast %134 : vector<8x1xf32> to vector<8x32xf32>
    %136 = arith.mulf %131, %135 : vector<8x32xf32>
    %c0_45 = arith.constant 0 : index
    %c0_46 = arith.constant 0 : index
    %137 = vector.load %arg11[%c0_45, %c0_46] : memref<1x32xf32, #tpu.memory_space<vmem>>, vector<1x32xf32>
    %138 = vector.shape_cast %137 : vector<1x32xf32> to vector<32xf32>
    %139 = vector.shape_cast %138 : vector<32xf32> to vector<1x32xf32>
    %140 = vector.broadcast %139 : vector<1x32xf32> to vector<8x32xf32>
    %141 = arith.mulf %136, %140 : vector<8x32xf32>
    %c0_47 = arith.constant 0 : index
    %c0_48 = arith.constant 0 : index
    %142 = vector.load %arg12[%c0_47, %c0_48] : memref<1x32xf32, #tpu.memory_space<vmem>>, vector<1x32xf32>
    %143 = vector.shape_cast %142 : vector<1x32xf32> to vector<32xf32>
    %144 = vector.shape_cast %143 : vector<32xf32> to vector<1x32xf32>
    %145 = vector.broadcast %144 : vector<1x32xf32> to vector<8x32xf32>
    %146 = arith.addf %141, %145 : vector<8x32xf32>
    %c0_49 = arith.constant 0 : index
    %c0_50 = arith.constant 0 : index
    %c0_51 = arith.constant 0 : index
    %147 = vector.load %arg13[%c0_49, %c0_50, %c0_51] : memref<1x8x32xf32, #tpu.memory_space<vmem>>, vector<1x8x32xf32>
    %148 = vector.shape_cast %147 : vector<1x8x32xf32> to vector<8x32xf32>
    %149 = vector.shape_cast %146 : vector<8x32xf32> to vector<1x8x32xf32>
    tpu.vector_store %arg13[%c0_49, %c0_50, %c0_51], %149 {strides = array<i32>} : memref<1x8x32xf32, #tpu.memory_space<vmem>>, vector<1x8x32xf32>,
    return
  }
  func.func @transform_0(%arg0: i32, %arg1: i32) -> (i32, i32, i32) {
    %c0_i32 = arith.constant 0 : i32
    %c0_i32_0 = arith.constant 0 : i32
    return %arg0, %arg1, %c0_i32 : i32, i32, i32
  }
  func.func @transform_1(%arg0: i32, %arg1: i32) -> (i32, i32, i32) {
    %c0_i32 = arith.constant 0 : i32
    %c0_i32_0 = arith.constant 0 : i32
    %c0_i32_1 = arith.constant 0 : i32
    return %arg0, %c0_i32, %c0_i32_0 : i32, i32, i32
  }
  func.func @transform_2(%arg0: i32, %arg1: i32) -> (i32, i32, i32, i32) {
    %c0_i32 = arith.constant 0 : i32
    %c0_i32_0 = arith.constant 0 : i32
    %c0_i32_1 = arith.constant 0 : i32
    %c0_i32_2 = arith.constant 0 : i32
    return %arg0, %c0_i32, %c0_i32_0, %c0_i32_1 : i32, i32, i32, i32
  }
  func.func @transform_3(%arg0: i32, %arg1: i32) -> (i32, i32) {
    %c0_i32 = arith.constant 0 : i32
    %c0_i32_0 = arith.constant 0 : i32
    %c0_i32_1 = arith.constant 0 : i32
    return %c0_i32, %c0_i32_0 : i32, i32
  }
  func.func @transform_4(%arg0: i32, %arg1: i32) -> (i32, i32) {
    %c0_i32 = arith.constant 0 : i32
    %c0_i32_0 = arith.constant 0 : i32
    %c0_i32_1 = arith.constant 0 : i32
    return %c0_i32, %c0_i32_0 : i32, i32
  }
  func.func @transform_5(%arg0: i32, %arg1: i32) -> (i32, i32) {
    %c0_i32 = arith.constant 0 : i32
    %c0_i32_0 = arith.constant 0 : i32
    %c0_i32_1 = arith.constant 0 : i32
    return %c0_i32, %c0_i32_0 : i32, i32
  }
  func.func @transform_6(%arg0: i32, %arg1: i32) -> (i32, i32) {
    %c0_i32 = arith.constant 0 : i32
    %c0_i32_0 = arith.constant 0 : i32
    %c0_i32_1 = arith.constant 0 : i32
    return %c0_i32, %c0_i32_0 : i32, i32
  }
  func.func @transform_7(%arg0: i32, %arg1: i32) -> (i32, i32) {
    %c0_i32 = arith.constant 0 : i32
    %c0_i32_0 = arith.constant 0 : i32
    %c0_i32_1 = arith.constant 0 : i32
    return %c0_i32, %c0_i32_0 : i32, i32
  }
  func.func @transform_8(%arg0: i32, %arg1: i32) -> (i32, i32) {
    %c0_i32 = arith.constant 0 : i32
    %c0_i32_0 = arith.constant 0 : i32
    %c0_i32_1 = arith.constant 0 : i32
    return %c0_i32, %c0_i32_0 : i32, i32
  }
  func.func @transform_9(%arg0: i32, %arg1: i32) -> (i32, i32) {
    %c0_i32 = arith.constant 0 : i32
    %c0_i32_0 = arith.constant 0 : i32
    %c0_i32_1 = arith.constant 0 : i32
    return %c0_i32, %c0_i32_0 : i32, i32
  }
  func.func @transform_10(%arg0: i32, %arg1: i32) -> (i32, i32) {
    %c0_i32 = arith.constant 0 : i32
    %c0_i32_0 = arith.constant 0 : i32
    %c0_i32_1 = arith.constant 0 : i32
    return %c0_i32, %c0_i32_0 : i32, i32
  }
  func.func @transform_11(%arg0: i32, %arg1: i32) -> (i32, i32, i32) {
    %c0_i32 = arith.constant 0 : i32
    %c0_i32_0 = arith.constant 0 : i32
    return %arg0, %arg1, %c0_i32 : i32, i32, i32
  }
}

</mosaic_0001>

<llo_original>
// kernel: tpu_custom_call.1
$region0: #{tpu_custom_call.1}
  #allocation0 [shape = 'u32[]', space=smem, size = 0x4, offset = 0x4, fixed_abs, tag = 'smem constant byte address 0x4 - core index']
  #allocation1 [shape = 'u32[144,128]{1,0:T(1,128)}', space=vmem, size = 0x12000, scoped, tag = 'internal scratch']
  %s0 = inlined_call_operand.hbm [shape: f32[2,8,32], index: 0, kind: input, shape index: {}]
  %s1 = inlined_call_operand.hbm [shape: f32[2,8,32], index: 1, kind: input, shape index: {}]
  %s2 = inlined_call_operand.vmem [shape: f32[2,1,1,8], index: 2, kind: input, shape index: {}]
  %s3 = inlined_call_operand.hbm [shape: bf16[32,32], index: 3, kind: input, shape index: {}]
  %s4 = inlined_call_operand.hbm [shape: f32[1,32], index: 4, kind: input, shape index: {}]
  %s5 = inlined_call_operand.vmem [shape: bf16[32,64], index: 5, kind: input, shape index: {}]
  %s6 = inlined_call_operand.vmem [shape: f32[1,64], index: 6, kind: input, shape index: {}]
  %s7 = inlined_call_operand.hbm [shape: bf16[32,32], index: 7, kind: input, shape index: {}]
  %s8 = inlined_call_operand.vmem [shape: f32[1,32], index: 8, kind: input, shape index: {}]
  %s9 = inlined_call_operand.vmem [shape: f32[1,32], index: 9, kind: input, shape index: {}]
  %s10 = inlined_call_operand.vmem [shape: f32[1,32], index: 10, kind: input, shape index: {}]
  %s11 = inlined_call_operand.hbm [shape: f32[2,8,32], index: 11, kind: output, shape index: {}]
  %s12 = sld [smem:[#allocation0]]
  $region97: #{tpu_custom_call.1} parent=0
    _
  %s14 = ssub.s32 1, %s12
  %s15 = scalar_select 0, %s14, %s12
  $region1: #{tpu_custom_call.1} parent=0
    #allocation2 [shape = 'u8[8192]{0}', space=vmem, size = 0x2000, scoped, tag = 'input window, operand 0']
    #allocation3 [shape = 's32[2]{0}', space=sflag, size = 0x8, scoped, tag = 'scoped memory for tpu_custom_call.1']
    #allocation4 [shape = 's32[2]{0}', space=sflag, size = 0x8, scoped, tag = 'scoped memory for tpu_custom_call.1']
    #allocation5 [shape = 'u8[8192]{0}', space=vmem, size = 0x2000, scoped, tag = 'input window, operand 1']
    #allocation6 [shape = 's32[2]{0}', space=sflag, size = 0x8, scoped, tag = 'scoped memory for tpu_custom_call.1']
    #allocation7 [shape = 'u8[8192]{0}', space=vmem, size = 0x2000, scoped, tag = 'input window, operand 3, single buffered']
    #allocation8 [shape = 'u8[512]{0}', space=vmem, size = 0x400, scoped, tag = 'input window, operand 4, single buffered']
    #allocation9 [shape = 's32[1]{0}', space=sflag, size = 0x4, scoped, tag = 'scoped memory for tpu_custom_call.1']
    #allocation10 [shape = 'u8[8192]{0}', space=vmem, size = 0x2000, scoped, tag = 'input window, operand 7, single buffered']
    #allocation11 [shape = 'u8[8192]{0}', space=vmem, size = 0x2000, scoped, tag = 'output window, operand 0']
    %16 = vsyncpa [#allocation3], 0
    %s17 = scalar_lea.sflag [#allocation3], 1
    %18 = vsyncpa %s17, 0
    %19 = vsyncpa [#allocation6], 0
    %s20 = scalar_lea.sflag [#allocation6], 1
    %21 = vsyncpa %s20, 0
    %22 = vsyncpa [#allocation9], 0
    %23 = vsyncpa [#allocation4], 0
    %s24 = scalar_lea.sflag [#allocation4], 1
    %25 = vsyncpa %s24, 0
    loop: start=0, step=1, limit=4
    $region2: #{tpu_custom_call.1} parent=1 // loop_pre_header
      _
    $region3: #{tpu_custom_call.1} parent=1 // loop_header
      %s27 = sphi 0, %s31
      %p28 = scmp.ge.s32.totalorder %s27, 4
      %s34 = sphi 0, %s46
      %s35 = sphi 0, %s42
      %s36 = sphi 0, %s34
      %s37 = sphi 0, %s35
      %s38 = sphi 0, %s36
      %s39 = sphi 0, %s37
      %s51 = sphi 0, %s53
      %s54 = sphi 0, %s51
      %s55 = sphi 0, %s54
      %s71 = sphi 0, %s55
      %s77 = sphi 0, %s79
      %s80 = sphi 0, %s77
      %s81 = sphi 0, %s80
      %s97 = sphi 0, %s81
      %s103 = sphi 0, %s105
      %s106 = sphi 0, %s103
      %s107 = sphi 0, %s106
      %s123 = sphi 0, %s107
      %s127 = sphi 0, %s127
      %s129 = sphi 0, %s127
      %s130 = sphi 0, %s129
      %s144 = sphi 0, %s130
      %s148 = sphi 0, %s148
      %s150 = sphi 0, %s148
      %s151 = sphi 0, %s150
      %s165 = sphi 0, %s151
      %s169 = sphi 0, %s169
      %s171 = sphi 0, %s169
      %s172 = sphi 0, %s171
      %s186 = sphi 0, %s172
      %s190 = sphi 0, %s190
      %s192 = sphi 0, %s190
      %s193 = sphi 0, %s192
      %s207 = sphi 0, %s193
      %s211 = sphi 0, %s211
      %s213 = sphi 0, %s211
      %s214 = sphi 0, %s213
      %s228 = sphi 0, %s214
      %s232 = sphi 0, %s232
      %s234 = sphi 0, %s232
      %s235 = sphi 0, %s234
      %s249 = sphi 0, %s235
      %s253 = sphi 0, %s253
      %s255 = sphi 0, %s253
      %s256 = sphi 0, %s255
      %s270 = sphi 0, %s256
      %s274 = sphi 0, %s274
      %s276 = sphi 0, %s274
      %s277 = sphi 0, %s276
      %s291 = sphi 0, %s277
      %s299 = sphi 0, %s301
      %s302 = sphi 0, %s299
      %s303 = sphi 0, %s302
      %s319 = sphi 0, %s303
    $region4: #{tpu_custom_call.1} parent=1 // loop_header_branch
      %30 = sbr.rel (%p28) target = $region8
    $region5: #{tpu_custom_call.1} parent=1 // loop_body
      %s32 = ssub.s32 %s27, 1
      %s33 = ssub.s32 %s27, 2
      %s40 = sadd.s32 1, %s35
      %p41 = scmp.ge.s32.totalorder %s40, 1
      %s42 = scalar_select %p41, 0, %s40
      %s43 = sadd.s32 1, %s34
      %s44 = scalar_select %p41, %s43, %s34
      %p45 = scmp.ge.s32.totalorder %s44, 2
      %s46 = scalar_select %p45, 0, %s44
      %s47 = ssub.s32 %s34, %s46
      %s48 = ssub.s32 %s35, %s42
      %s49 = sor.u32 %s47, %s48
      %p50 = scmp.eq.s32.totalorder %s49, 0
      %s52 = sadd.s32 %s51, 1
      %s53 = scalar_select %p50, %s51, %s52
      %p56 = pneg %p50
      %p57 = scmp.eq.s32.totalorder %s27, 1
      %p58 = por %p56, %p57
      %p59 = scmp.ne.s32.totalorder %s51, %s54
      %p60 = scmp.eq.s32.totalorder %s27, 0
      %p61 = por %p59, %p60
      %p62 = scmp.ne.s32.totalorder %s51, %s54
      %p63 = scmp.eq.s32.totalorder %s32, 1
      %p64 = por %p62, %p63
      %p65 = scmp.ne.s32.totalorder %s54, %s55
      %p66 = scmp.eq.s32.totalorder %s32, 0
      %p67 = por %p65, %p66
      %p68 = scmp.ne.s32.totalorder %s54, %s55
      %p69 = scmp.eq.s32.totalorder %s33, 1
      %p70 = por %p68, %p69
      %p72 = scmp.ne.s32.totalorder %s55, %s71
      %p73 = scmp.eq.s32.totalorder %s33, 0
      %p74 = por %p72, %p73
      %s75 = ssub.s32 %s34, %s46
      %p76 = scmp.eq.s32.totalorder %s75, 0
      %s78 = sadd.s32 %s77, 1
      %s79 = scalar_select %p76, %s77, %s78
      %p82 = pneg %p76
      %p83 = scmp.eq.s32.totalorder %s27, 1
      %p84 = por %p82, %p83
      %p85 = scmp.ne.s32.totalorder %s77, %s80
      %p86 = scmp.eq.s32.totalorder %s27, 0
      %p87 = por %p85, %p86
      %p88 = scmp.ne.s32.totalorder %s77, %s80
      %p89 = scmp.eq.s32.totalorder %s32, 1
      %p90 = por %p88, %p89
      %p91 = scmp.ne.s32.totalorder %s80, %s81
      %p92 = scmp.eq.s32.totalorder %s32, 0
      %p93 = por %p91, %p92
      %p94 = scmp.ne.s32.totalorder %s80, %s81
      %p95 = scmp.eq.s32.totalorder %s33, 1
      %p96 = por %p94, %p95
      %p98 = scmp.ne.s32.totalorder %s81, %s97
      %p99 = scmp.eq.s32.totalorder %s33, 0
      %p100 = por %p98, %p99
      %s101 = ssub.s32 %s34, %s46
      %p102 = scmp.eq.s32.totalorder %s101, 0
      %s104 = sadd.s32 %s103, 1
      %s105 = scalar_select %p102, %s103, %s104
      %p108 = pneg %p102
      %p109 = scmp.eq.s32.totalorder %s27, 1
      %p110 = por %p108, %p109
      %p111 = scmp.ne.s32.totalorder %s103, %s106
      %p112 = scmp.eq.s32.totalorder %s27, 0
      %p113 = por %p111, %p112
      %p114 = scmp.ne.s32.totalorder %s103, %s106
      %p115 = scmp.eq.s32.totalorder %s32, 1
      %p116 = por %p114, %p115
      %p117 = scmp.ne.s32.totalorder %s106, %s107
      %p118 = scmp.eq.s32.totalorder %s32, 0
      %p119 = por %p117, %p118
      %p120 = scmp.ne.s32.totalorder %s106, %s107
      %p121 = scmp.eq.s32.totalorder %s33, 1
      %p122 = por %p120, %p121
      %p124 = scmp.ne.s32.totalorder %s107, %s123
      %p125 = scmp.eq.s32.totalorder %s33, 0
      %p126 = por %p124, %p125
      %s128 = sadd.s32 %s127, 1
      %p131 = scmp.eq.s32.totalorder %s27, 1
      %p132 = scmp.ne.s32.totalorder %s127, %s129
      %p133 = scmp.eq.s32.totalorder %s27, 0
      %p134 = por %p132, %p133
      %p135 = scmp.ne.s32.totalorder %s127, %s129
      %p136 = scmp.eq.s32.totalorder %s32, 1
      %p137 = por %p135, %p136
      %p138 = scmp.ne.s32.totalorder %s129, %s130
      %p139 = scmp.eq.s32.totalorder %s32, 0
      %p140 = por %p138, %p139
      %p141 = scmp.ne.s32.totalorder %s129, %s130
      %p142 = scmp.eq.s32.totalorder %s33, 1
      %p143 = por %p141, %p142
      %p145 = scmp.ne.s32.totalorder %s130, %s144
      %p146 = scmp.eq.s32.totalorder %s33, 0
      %p147 = por %p145, %p146
      %s149 = sadd.s32 %s148, 1
      %p152 = scmp.eq.s32.totalorder %s27, 1
      %p153 = scmp.ne.s32.totalorder %s148, %s150
      %p154 = scmp.eq.s32.totalorder %s27, 0
      %p155 = por %p153, %p154
      %p156 = scmp.ne.s32.totalorder %s148, %s150
      %p157 = scmp.eq.s32.totalorder %s32, 1
      %p158 = por %p156, %p157
      %p159 = scmp.ne.s32.totalorder %s150, %s151
      %p160 = scmp.eq.s32.totalorder %s32, 0
      %p161 = por %p159, %p160
      %p162 = scmp.ne.s32.totalorder %s150, %s151
      %p163 = scmp.eq.s32.totalorder %s33, 1
      %p164 = por %p162, %p163
      %p166 = scmp.ne.s32.totalorder %s151, %s165
      %p167 = scmp.eq.s32.totalorder %s33, 0
      %p168 = por %p166, %p167
      %s170 = sadd.s32 %s169, 1
      %p173 = scmp.eq.s32.totalorder %s27, 1
      %p174 = scmp.ne.s32.totalorder %s169, %s171
      %p175 = scmp.eq.s32.totalorder %s27, 0
      %p176 = por %p174, %p175
      %p177 = scmp.ne.s32.totalorder %s169, %s171
      %p178 = scmp.eq.s32.totalorder %s32, 1
      %p179 = por %p177, %p178
      %p180 = scmp.ne.s32.totalorder %s171, %s172
      %p181 = scmp.eq.s32.totalorder %s32, 0
      %p182 = por %p180, %p181
      %p183 = scmp.ne.s32.totalorder %s171, %s172
      %p184 = scmp.eq.s32.totalorder %s33, 1
      %p185 = por %p183, %p184
      %p187 = scmp.ne.s32.totalorder %s172, %s186
      %p188 = scmp.eq.s32.totalorder %s33, 0
      %p189 = por %p187, %p188
      %s191 = sadd.s32 %s190, 1
      %p194 = scmp.eq.s32.totalorder %s27, 1
      %p195 = scmp.ne.s32.totalorder %s190, %s192
      %p196 = scmp.eq.s32.totalorder %s27, 0
      %p197 = por %p195, %p196
      %p198 = scmp.ne.s32.totalorder %s190, %s192
      %p199 = scmp.eq.s32.totalorder %s32, 1
      %p200 = por %p198, %p199
      %p201 = scmp.ne.s32.totalorder %s192, %s193
      %p202 = scmp.eq.s32.totalorder %s32, 0
      %p203 = por %p201, %p202
      %p204 = scmp.ne.s32.totalorder %s192, %s193
      %p205 = scmp.eq.s32.totalorder %s33, 1
      %p206 = por %p204, %p205
      %p208 = scmp.ne.s32.totalorder %s193, %s207
      %p209 = scmp.eq.s32.totalorder %s33, 0
      %p210 = por %p208, %p209
      %s212 = sadd.s32 %s211, 1
      %p215 = scmp.eq.s32.totalorder %s27, 1
      %p216 = scmp.ne.s32.totalorder %s211, %s213
      %p217 = scmp.eq.s32.totalorder %s27, 0
      %p218 = por %p216, %p217
      %p219 = scmp.ne.s32.totalorder %s211, %s213
      %p220 = scmp.eq.s32.totalorder %s32, 1
      %p221 = por %p219, %p220
      %p222 = scmp.ne.s32.totalorder %s213, %s214
      %p223 = scmp.eq.s32.totalorder %s32, 0
      %p224 = por %p222, %p223
      %p225 = scmp.ne.s32.totalorder %s213, %s214
      %p226 = scmp.eq.s32.totalorder %s33, 1
      %p227 = por %p225, %p226
      %p229 = scmp.ne.s32.totalorder %s214, %s228
      %p230 = scmp.eq.s32.totalorder %s33, 0
      %p231 = por %p229, %p230
      %s233 = sadd.s32 %s232, 1
      %p236 = scmp.eq.s32.totalorder %s27, 1
      %p237 = scmp.ne.s32.totalorder %s232, %s234
      %p238 = scmp.eq.s32.totalorder %s27, 0
      %p239 = por %p237, %p238
      %p240 = scmp.ne.s32.totalorder %s232, %s234
      %p241 = scmp.eq.s32.totalorder %s32, 1
      %p242 = por %p240, %p241
      %p243 = scmp.ne.s32.totalorder %s234, %s235
      %p244 = scmp.eq.s32.totalorder %s32, 0
      %p245 = por %p243, %p244
      %p246 = scmp.ne.s32.totalorder %s234, %s235
      %p247 = scmp.eq.s32.totalorder %s33, 1
      %p248 = por %p246, %p247
      %p250 = scmp.ne.s32.totalorder %s235, %s249
      %p251 = scmp.eq.s32.totalorder %s33, 0
      %p252 = por %p250, %p251
      %s254 = sadd.s32 %s253, 1
      %p257 = scmp.eq.s32.totalorder %s27, 1
      %p258 = scmp.ne.s32.totalorder %s253, %s255
      %p259 = scmp.eq.s32.totalorder %s27, 0
      %p260 = por %p258, %p259
      %p261 = scmp.ne.s32.totalorder %s253, %s255
      %p262 = scmp.eq.s32.totalorder %s32, 1
      %p263 = por %p261, %p262
      %p264 = scmp.ne.s32.totalorder %s255, %s256
      %p265 = scmp.eq.s32.totalorder %s32, 0
      %p266 = por %p264, %p265
      %p267 = scmp.ne.s32.totalorder %s255, %s256
      %p268 = scmp.eq.s32.totalorder %s33, 1
      %p269 = por %p267, %p268
      %p271 = scmp.ne.s32.totalorder %s256, %s270
      %p272 = scmp.eq.s32.totalorder %s33, 0
      %p273 = por %p271, %p272
      %s275 = sadd.s32 %s274, 1
      %p278 = scmp.eq.s32.totalorder %s27, 1
      %p279 = scmp.ne.s32.totalorder %s274, %s276
      %p280 = scmp.eq.s32.totalorder %s27, 0
      %p281 = por %p279, %p280
      %p282 = scmp.ne.s32.totalorder %s274, %s276
      %p283 = scmp.eq.s32.totalorder %s32, 1
      %p284 = por %p282, %p283
      %p285 = scmp.ne.s32.totalorder %s276, %s277
      %p286 = scmp.eq.s32.totalorder %s32, 0
      %p287 = por %p285, %p286
      %p288 = scmp.ne.s32.totalorder %s276, %s277
      %p289 = scmp.eq.s32.totalorder %s33, 1
      %p290 = por %p288, %p289
      %p292 = scmp.ne.s32.totalorder %s277, %s291
      %p293 = scmp.eq.s32.totalorder %s33, 0
      %p294 = por %p292, %p293
      %s295 = ssub.s32 %s34, %s46
      %s296 = ssub.s32 %s35, %s42
      %s297 = sor.u32 %s295, %s296
      %p298 = scmp.eq.s32.totalorder %s297, 0
      %s300 = sadd.s32 %s299, 1
      %s301 = scalar_select %p298, %s299, %s300
      %p304 = pneg %p298
      %p305 = scmp.eq.s32.totalorder %s27, 1
      %p306 = por %p304, %p305
      %p307 = scmp.ne.s32.totalorder %s299, %s302
      %p308 = scmp.eq.s32.totalorder %s27, 0
      %p309 = por %p307, %p308
      %p310 = scmp.ne.s32.totalorder %s299, %s302
      %p311 = scmp.eq.s32.totalorder %s32, 1
      %p312 = por %p310, %p311
      %p313 = scmp.ne.s32.totalorder %s302, %s303
      %p314 = scmp.eq.s32.totalorder %s32, 0
      %p315 = por %p313, %p314
      %p316 = scmp.ne.s32.totalorder %s302, %s303
      %p317 = scmp.eq.s32.totalorder %s33, 1
      %p318 = por %p316, %p317
      %p320 = scmp.ne.s32.totalorder %s303, %s319
      %p321 = scmp.eq.s32.totalorder %s33, 0
      %p322 = por %p320, %p321
      %p323 = scmp.le.s32.totalorder 1, %s27
      %p324 = scmp.lt.s32.totalorder %s27, 3
      %p325 = pnand %p323, %p324
      %p326 = pneg %p325
      // Predicated region
      $region9: #{tpu_custom_call.1} parent=5 // pred_check
        _
      $region10: #{tpu_custom_call.1} parent=5 // pred_check_branch
        %328 = sbr.rel (%p325) target = $region12
      $region11: #{tpu_custom_call.1} parent=5 // pred_region
        %s329 = ssub.s32 %s27, 1
        // Predicated region
        $region13: #{tpu_custom_call.1} parent=11 // pred_check
          %p330 = pneg %p140
        $region14: #{tpu_custom_call.1} parent=11 // pred_check_branch
          %332 = sbr.rel (%p330) target = $region16
        $region15: #{tpu_custom_call.1} parent=11 // pred_region
          %s334 = ssub.s32 256, 256
          %335 = vsyncadd [#allocation6], %s334
          %s336 = sshll.u32 [#allocation7], 4
          %s337 = int_to_ptr.vmem [resolvable:$true] %s336
          %342 = dma.hbm_to_vmem [thread:$0]  %s3, 256, %s337, [#allocation6], 64, 64, 4
        $region16: #{tpu_custom_call.1} parent=11 // pred_fallthru
          _
        // Predicated region
        $region17: #{tpu_custom_call.1} parent=11 // pred_check
          %p343 = pneg %p161
        $region18: #{tpu_custom_call.1} parent=11 // pred_check_branch
          %345 = sbr.rel (%p343) target = $region20
        $region19: #{tpu_custom_call.1} parent=11 // pred_region
          %s347 = ssub.s32 16, 16
          %348 = vsyncadd [#allocation9], %s347
          %s350 = sshll.u32 [#allocation8], 4
          %s351 = int_to_ptr.vmem [resolvable:$true] %s350
          %353 = dma.hbm_to_vmem [thread:$0]  %s4, 16, %s351, [#allocation9]
        $region20: #{tpu_custom_call.1} parent=11 // pred_fallthru
          _
        // Predicated region
        $region21: #{tpu_custom_call.1} parent=11 // pred_check
          %p354 = pneg %p182
        $region22: #{tpu_custom_call.1} parent=11 // pred_check_branch
          %356 = sbr.rel (%p354) target = $region24
        $region23: #{tpu_custom_call.1} parent=11 // pred_region
          _
        $region24: #{tpu_custom_call.1} parent=11 // pred_fallthru
          _
        // Predicated region
        $region25: #{tpu_custom_call.1} parent=11 // pred_check
          %p357 = pneg %p203
        $region26: #{tpu_custom_call.1} parent=11 // pred_check_branch
          %359 = sbr.rel (%p357) target = $region28
        $region27: #{tpu_custom_call.1} parent=11 // pred_region
          _
        $region28: #{tpu_custom_call.1} parent=11 // pred_fallthru
          _
        // Predicated region
        $region29: #{tpu_custom_call.1} parent=11 // pred_check
          %p360 = pneg %p224
        $region30: #{tpu_custom_call.1} parent=11 // pred_check_branch
          %362 = sbr.rel (%p360) target = $region32
        $region31: #{tpu_custom_call.1} parent=11 // pred_region
          %s364 = ssub.s32 256, 256
          %365 = vsyncadd [#allocation9], %s364
          %s366 = sshll.u32 [#allocation10], 4
          %s367 = int_to_ptr.vmem [resolvable:$true] %s366
          %372 = dma.hbm_to_vmem [thread:$0]  %s7, 256, %s367, [#allocation9], 64, 64, 4
        $region32: #{tpu_custom_call.1} parent=11 // pred_fallthru
          _
        // Predicated region
        $region33: #{tpu_custom_call.1} parent=11 // pred_check
          %p373 = pneg %p245
        $region34: #{tpu_custom_call.1} parent=11 // pred_check_branch
          %375 = sbr.rel (%p373) target = $region36
        $region35: #{tpu_custom_call.1} parent=11 // pred_region
          _
        $region36: #{tpu_custom_call.1} parent=11 // pred_fallthru
          _
        // Predicated region
        $region37: #{tpu_custom_call.1} parent=11 // pred_check
          %p376 = pneg %p266
        $region38: #{tpu_custom_call.1} parent=11 // pred_check_branch
          %378 = sbr.rel (%p376) target = $region40
        $region39: #{tpu_custom_call.1} parent=11 // pred_region
          _
        $region40: #{tpu_custom_call.1} parent=11 // pred_fallthru
          _
        // Predicated region
        $region41: #{tpu_custom_call.1} parent=11 // pred_check
          %p379 = pneg %p287
        $region42: #{tpu_custom_call.1} parent=11 // pred_check_branch
          %381 = sbr.rel (%p379) target = $region44
        $region43: #{tpu_custom_call.1} parent=11 // pred_region
          _
        $region44: #{tpu_custom_call.1} parent=11 // pred_fallthru
          _
      $region12: #{tpu_custom_call.1} parent=5 // pred_fallthru
        _
      %p382 = scmp.lt.s32.totalorder %s27, 2
      // Predicated region
      $region45: #{tpu_custom_call.1} parent=5 // pred_check
        %p383 = pneg %p382
      $region46: #{tpu_custom_call.1} parent=5 // pred_check_branch
        %385 = sbr.rel (%p383) target = $region48
      $region47: #{tpu_custom_call.1} parent=5 // pred_region
        // Predicated region
        $region49: #{tpu_custom_call.1} parent=47 // pred_check
          %p386 = pneg %p61
        $region50: #{tpu_custom_call.1} parent=47 // pred_check_branch
          %388 = sbr.rel (%p386) target = $region52
        $region51: #{tpu_custom_call.1} parent=47 // pred_region
          %s389 = sand.u32 %s51, 1
          %s390 = scalar_lea.sflag [#allocation3], %s389
          %s391 = sand.u32 %s51, 1
          %s392 = smul.addr %s391, 8
          %s393 = scalar_lea.vmem [#allocation2], %s392
          %s395 = ssub.s32 128, 128
          %396 = vsyncadd %s390, %s395
          %s397 = sadd.s32 %s35, %s34
          %s398 = smul.addr %s397, 128
          %s399 = scalar_lea.hbm %s0, %s398
          %s401 = sshll.u32 %s393, 4
          %s402 = int_to_ptr.vmem [resolvable:$true] %s401
          %404 = dma.hbm_to_vmem [thread:$0]  %s399, 128, %s402, %s390
        $region52: #{tpu_custom_call.1} parent=47 // pred_fallthru
          _
        // Predicated region
        $region53: #{tpu_custom_call.1} parent=47 // pred_check
          %p405 = pneg %p87
        $region54: #{tpu_custom_call.1} parent=47 // pred_check_branch
          %407 = sbr.rel (%p405) target = $region56
        $region55: #{tpu_custom_call.1} parent=47 // pred_region
          %s408 = sand.u32 %s27, 1
          %s409 = scalar_lea.sflag [#allocation6], %s408
          %s410 = sand.u32 %s77, 1
          %s411 = smul.addr %s410, 8
          %s412 = scalar_lea.vmem [#allocation5], %s411
          %s414 = ssub.s32 128, 128
          %415 = vsyncadd %s409, %s414
          %s416 = smul.addr %s34, 128
          %s417 = scalar_lea.hbm %s1, %s416
          %s419 = sshll.u32 %s412, 4
          %s420 = int_to_ptr.vmem [resolvable:$true] %s419
          %422 = dma.hbm_to_vmem [thread:$0]  %s417, 128, %s420, %s409
        $region56: #{tpu_custom_call.1} parent=47 // pred_fallthru
          _
        // Predicated region
        $region57: #{tpu_custom_call.1} parent=47 // pred_check
          %p423 = pneg %p113
        $region58: #{tpu_custom_call.1} parent=47 // pred_check_branch
          %425 = sbr.rel (%p423) target = $region60
        $region59: #{tpu_custom_call.1} parent=47 // pred_region
          %p426 = scmp.lt.s32.totalorder %s34, 1
          %s427 = scalar_select %p426, %s34, 1
          %s428 = scalar_lea.vmem %s2, %s427
        $region60: #{tpu_custom_call.1} parent=47 // pred_fallthru
          _
      $region48: #{tpu_custom_call.1} parent=5 // pred_fallthru
        _
      %p429 = scmp.le.s32.totalorder 1, %s27
      %p430 = scmp.lt.s32.totalorder %s27, 3
      %p431 = pnand %p429, %p430
      %p432 = pneg %p431
      // Predicated region
      $region61: #{tpu_custom_call.1} parent=5 // pred_check
        _
      $region62: #{tpu_custom_call.1} parent=5 // pred_check_branch
        %434 = sbr.rel (%p431) target = $region64
      $region63: #{tpu_custom_call.1} parent=5 // pred_region
        %s435 = ssub.s32 %s27, 1
        %s436 = sand.u32 %s54, 1
        %s437 = scalar_lea.sflag [#allocation3], %s436
        %s438 = sand.u32 %s54, 1
        %s439 = smul.addr %s438, 8
        %s440 = scalar_lea.vmem [#allocation2], %s439
        // Predicated region
        $region65: #{tpu_custom_call.1} parent=63 // pred_check
          %p441 = pneg %p67
        $region66: #{tpu_custom_call.1} parent=63 // pred_check_branch
          %443 = sbr.rel (%p441) target = $region68
        $region67: #{tpu_custom_call.1} parent=63 // pred_region
          %444 = dma.done %s437, 128
        $region68: #{tpu_custom_call.1} parent=63 // pred_fallthru
          _
        %s445 = sand.u32 %s32, 1
        %s446 = scalar_lea.sflag [#allocation6], %s445
        %s447 = sand.u32 %s80, 1
        %s448 = smul.addr %s447, 8
        %s449 = scalar_lea.vmem [#allocation5], %s448
        // Predicated region
        $region69: #{tpu_custom_call.1} parent=63 // pred_check
          %p450 = pneg %p93
        $region70: #{tpu_custom_call.1} parent=63 // pred_check_branch
          %452 = sbr.rel (%p450) target = $region72
        $region71: #{tpu_custom_call.1} parent=63 // pred_region
          %453 = dma.done %s446, 128
        $region72: #{tpu_custom_call.1} parent=63 // pred_fallthru
          _
        // Predicated region
        $region73: #{tpu_custom_call.1} parent=63 // pred_check
          %p454 = pneg %p140
        $region74: #{tpu_custom_call.1} parent=63 // pred_check_branch
          %456 = sbr.rel (%p454) target = $region76
        $region75: #{tpu_custom_call.1} parent=63 // pred_region
          %457 = dma.done [#allocation6], 256
        $region76: #{tpu_custom_call.1} parent=63 // pred_fallthru
          _
        // Predicated region
        $region77: #{tpu_custom_call.1} parent=63 // pred_check
          %p458 = pneg %p161
        $region78: #{tpu_custom_call.1} parent=63 // pred_check_branch
          %460 = sbr.rel (%p458) target = $region80
        $region79: #{tpu_custom_call.1} parent=63 // pred_region
          %461 = dma.done [#allocation9], 16
        $region80: #{tpu_custom_call.1} parent=63 // pred_fallthru
          _
        // Predicated region
        $region81: #{tpu_custom_call.1} parent=63 // pred_check
          %p462 = pneg %p224
        $region82: #{tpu_custom_call.1} parent=63 // pred_check_branch
          %464 = sbr.rel (%p462) target = $region84
        $region83: #{tpu_custom_call.1} parent=63 // pred_region
          %465 = dma.done [#allocation9], 256
        $region84: #{tpu_custom_call.1} parent=63 // pred_fallthru
          _
        %s466 = sand.u32 %s54, 1
        %s467 = scalar_lea.sflag [#allocation3], %s466
        %s468 = sand.u32 %s54, 1
        %s469 = smul.addr %s468, 8
        %s470 = scalar_lea.vmem [#allocation2], %s469
        %p471 = pneg %p67
        %p472 = pneg %p64
        %s473 = sand.u32 %s32, 1
        %s474 = scalar_lea.sflag [#allocation6], %s473
        %s475 = sand.u32 %s80, 1
        %s476 = smul.addr %s475, 8
        %s477 = scalar_lea.vmem [#allocation5], %s476
        %p478 = pneg %p93
        %p479 = pneg %p90
        %p480 = scmp.lt.s32.totalorder %s36, 1
        %s481 = scalar_select %p480, %s36, 1
        %s482 = scalar_lea.vmem %s2, %s481
        %p483 = pneg %p119
        %p484 = pneg %p116
        %p485 = pneg %p140
        %p486 = pneg %p137
        %p487 = pneg %p161
        %p488 = pneg %p158
        %p489 = pneg %p182
        %p490 = pneg %p179
        %p491 = pneg %p203
        %p492 = pneg %p200
        %p493 = pneg %p224
        %p494 = pneg %p221
        %p495 = pneg %p245
        %p496 = pneg %p242
        %p497 = pneg %p266
        %p498 = pneg %p263
        %p499 = pneg %p287
        %p500 = pneg %p284
        %p501 = pneg %p315
        %p502 = pneg %p312
        %s503 = sand.u32 %s302, 1
        %s504 = scalar_lea.sflag [#allocation4], %s503
        %s505 = sand.u32 %s302, 1
        %s506 = smul.addr %s505, 8
        %s507 = scalar_lea.vmem [#allocation11], %s506
        %p508 = scmp.lt.s32.totalorder %s36, 1
        %s509 = scalar_select %p508, %s36, 1
        %s510 = scalar_lea.vmem %s2, %s509
        %v512 = vld [vmem:[%s440] sm:$0xff]
        %v513 = vld [vmem:[%s449] sm:$0xff]
        %v514 = vpack.c.bf16 %v512, %v512
        %v515 = vpack.c.bf16 %v513, %v513
        %v516 = vld [vmem:[#allocation7] sm:$0xf]
        %v517 = vld [vmem:[#allocation7 + $0x4] sm:$0xf]
        %v518 = vld [vmem:[#allocation7 + $0x8] sm:$0xf]
        %v519 = vld [vmem:[#allocation7 + $0xc] sm:$0xf]
        %v520 = vld [vmem:[#allocation8] sm:$0x1]
        %v522 = vlaneseq
        %v523 = vshrl.u32 %v522, 7
        %v524 = vsub.s32 0, %v523
        %v525 = vrot.slane %v520, %v524
        %v531 = vunpack.c.l.b16 %v516
        %v532 = vunpack.c.l.b16 %v517
        %v533 = vunpack.c.l.b16 %v518
        %v534 = vunpack.c.l.b16 %v519
        %v535 = vpack.c.b16 %v532, %v531
        %v536 = vpack.c.b16 %v534, %v533
        %vm539 = vcmask 261120
        %v541 = vsel %vm539, %v514, 0
        %543 = vmatprep.subr.bf16.mxu0 0
        %544 = vmatpush1.bf16.msra.mxu0 %v535
        %545 = vmatprep.subr.bf16.mxu0 0
        %546 = vmatpush1.bf16.msra.mxu0 %v536
        %547 = vmatprep.subr.bf16.mxu0 0
        %548 = vmatpush1.bf16.msra.mxu0 0
        %549 = vmatprep.subr.bf16.mxu0 0
        %550 = vmatpush1.bf16.msra.mxu0 0
        %551 = vmatprep.subr.bf16.mxu0 0
        %552 = vmatpush1.bf16.msra.mxu0 0
        %553 = vmatprep.subr.bf16.mxu0 0
        %554 = vmatpush1.bf16.msra.mxu0 0
        %555 = vmatprep.subr.bf16.mxu0 0
        %556 = vmatpush1.bf16.msra.mxu0 0
        %557 = vmatprep.subr.bf16.mxu0 0
        %558 = vmatpush1.bf16.msra.mxu0 0
        %559 = vmatprep.subr.bf16.mxu0 0
        %560 = vmatpush1.bf16.msra.mxu0 0
        %561 = vmatprep.subr.bf16.mxu0 0
        %562 = vmatpush1.bf16.msra.mxu0 0
        %563 = vmatprep.subr.bf16.mxu0 0
        %564 = vmatpush1.bf16.msra.mxu0 0
        %565 = vmatprep.subr.bf16.mxu0 0
        %566 = vmatpush1.bf16.msra.mxu0 0
        %567 = vmatprep.subr.bf16.mxu0 0
        %568 = vmatpush1.bf16.msra.mxu0 0
        %569 = vmatprep.subr.bf16.mxu0 0
        %570 = vmatpush1.bf16.msra.mxu0 0
        %571 = vmatprep.subr.bf16.mxu0 0
        %572 = vmatpush1.bf16.msra.mxu0 0
        %573 = vmatprep.subr.bf16.mxu0 0
        %574 = vmatpush1.bf16.msra.mxu0 0
        %575 = vmatprep.mubr.bf16.mxu0 0
        %576 = vmatmul.mubr.bf16.gmra.mrb[0].mxu0 %v541
        %v577 = vpop.f32.mrb[0].mxu0
        %v578 = vadd.f32 %v525, %v577
        %v579 = vpop.f32.mrb[0].mxu0
        %v580 = vpop.f32.mrb[0].mxu0
        %v581 = vpop.f32.mrb[0].mxu0
        %582 = vdwg.mxu0
        %v583 = vmul.f32 %v578, 0.35355338
        %v584 = vld [vmem:[%s5] sm:$0xf]
        %v585 = vld [vmem:[%s5 + $0x4] sm:$0xf]
        %v586 = vld [vmem:[%s5 + $0x8] sm:$0xf]
        %v587 = vld [vmem:[%s5 + $0xc] sm:$0xf]
        %v588 = vld [vmem:[%s6] sm:$0x1]
        %v590 = vlaneseq
        %v591 = vshrl.u32 %v590, 7
        %v592 = vsub.s32 0, %v591
        %v593 = vrot.slane %v588, %v592
        %v599 = vunpack.c.l.b16 %v584
        %v600 = vunpack.c.l.b16 %v585
        %v601 = vunpack.c.l.b16 %v586
        %v602 = vunpack.c.l.b16 %v587
        %v603 = vpack.c.b16 %v600, %v599
        %v604 = vpack.c.b16 %v602, %v601
        %v608 = vsel %vm539, %v515, 0
        %610 = vmatprep.subr.bf16.mxu0 0
        %611 = vmatpush1.bf16.msra.mxu0 %v603
        %612 = vmatprep.subr.bf16.mxu0 0
        %613 = vmatpush1.bf16.msra.mxu0 %v604
        %614 = vmatprep.subr.bf16.mxu0 0
        %615 = vmatpush1.bf16.msra.mxu0 0
        %616 = vmatprep.subr.bf16.mxu0 0
        %617 = vmatpush1.bf16.msra.mxu0 0
        %618 = vmatprep.subr.bf16.mxu0 0
        %619 = vmatpush1.bf16.msra.mxu0 0
        %620 = vmatprep.subr.bf16.mxu0 0
        %621 = vmatpush1.bf16.msra.mxu0 0
        %622 = vmatprep.subr.bf16.mxu0 0
        %623 = vmatpush1.bf16.msra.mxu0 0
        %624 = vmatprep.subr.bf16.mxu0 0
        %625 = vmatpush1.bf16.msra.mxu0 0
        %626 = vmatprep.subr.bf16.mxu0 0
        %627 = vmatpush1.bf16.msra.mxu0 0
        %628 = vmatprep.subr.bf16.mxu0 0
        %629 = vmatpush1.bf16.msra.mxu0 0
        %630 = vmatprep.subr.bf16.mxu0 0
        %631 = vmatpush1.bf16.msra.mxu0 0
        %632 = vmatprep.subr.bf16.mxu0 0
        %633 = vmatpush1.bf16.msra.mxu0 0
        %634 = vmatprep.subr.bf16.mxu0 0
        %635 = vmatpush1.bf16.msra.mxu0 0
        %636 = vmatprep.subr.bf16.mxu0 0
        %637 = vmatpush1.bf16.msra.mxu0 0
        %638 = vmatprep.subr.bf16.mxu0 0
        %639 = vmatpush1.bf16.msra.mxu0 0
        %640 = vmatprep.subr.bf16.mxu0 0
        %641 = vmatpush1.bf16.msra.mxu0 0
        %642 = vmatprep.mubr.bf16.mxu0 0
        %643 = vmatmul.mubr.bf16.gmra.mrb[0].mxu0 %v608
        %v644 = vpop.f32.mrb[0].mxu0
        %v645 = vadd.f32 %v593, %v644
        %v646 = vpop.f32.mrb[0].mxu0
        %v647 = vpop.f32.mrb[0].mxu0
        %v648 = vpop.f32.mrb[0].mxu0
        %649 = vdwg.mxu0
        %v650 = vld [vmem:[%s510] sm:$0x1]
        %v652 = vlaneseq
        %v653 = vshrl.u32 %v652, 7
        %v654 = vsub.s32 0, %v653
        %v655 = vrot.slane %v650, %v654
        %v657 = vpack.c.bf16 %v583, %v583
        %v658 = vpack.c.bf16 %v645, %v645
        %vm659 = vcmask 64512
        %v661 = vsel %vm659, %v657, 0
        %v664 = vsel %vm659, %v658, 0
        %666 = vmatprep.subr.bf16.mxu0 0
        %667 = vmatpush1.bf16.xpose.msra.mxu0 %v664
        %668 = vmatprep.subr.bf16.mxu0 0
        %669 = vmatpush1.bf16.xpose.msra.mxu0 0
        %670 = vmatprep.subr.bf16.mxu0 0
        %671 = vmatpush1.bf16.xpose.msra.mxu0 0
        %672 = vmatprep.subr.bf16.mxu0 0
        %673 = vmatpush1.bf16.xpose.msra.mxu0 0
        %674 = vmatprep.subr.bf16.mxu0 0
        %675 = vmatpush1.bf16.xpose.msra.mxu0 0
        %676 = vmatprep.subr.bf16.mxu0 0
        %677 = vmatpush1.bf16.xpose.msra.mxu0 0
        %678 = vmatprep.subr.bf16.mxu0 0
        %679 = vmatpush1.bf16.xpose.msra.mxu0 0
        %680 = vmatprep.subr.bf16.mxu0 0
        %681 = vmatpush1.bf16.xpose.msra.mxu0 0
        %682 = vmatprep.subr.bf16.mxu0 0
        %683 = vmatpush1.bf16.xpose.msra.mxu0 0
        %684 = vmatprep.subr.bf16.mxu0 0
        %685 = vmatpush1.bf16.xpose.msra.mxu0 0
        %686 = vmatprep.subr.bf16.mxu0 0
        %687 = vmatpush1.bf16.xpose.msra.mxu0 0
        %688 = vmatprep.subr.bf16.mxu0 0
        %689 = vmatpush1.bf16.xpose.msra.mxu0 0
        %690 = vmatprep.subr.bf16.mxu0 0
        %691 = vmatpush1.bf16.xpose.msra.mxu0 0
        %692 = vmatprep.subr.bf16.mxu0 0
        %693 = vmatpush1.bf16.xpose.msra.mxu0 0
        %694 = vmatprep.subr.bf16.mxu0 0
        %695 = vmatpush1.bf16.xpose.msra.mxu0 0
        %696 = vmatprep.subr.bf16.mxu0 0
        %697 = vmatpush1.bf16.xpose.msra.mxu0 0
        %698 = vmatprep.mubr.bf16.mxu0 0
        %699 = vmatmul.mubr.bf16.gmra.mrb[0].mxu0 %v661
        %v700 = vpop.f32.mrb[0].mxu0
        %v701 = vadd.f32 %v655, %v700
        %v702 = vpop.f32.mrb[0].mxu0
        %v703 = vpop.f32.mrb[0].mxu0
        %v704 = vpop.f32.mrb[0].mxu0
        %705 = vdwg.mxu0
        %v706 = vsel %vm659, %v701, -inf
        %707 = vmax.xlane.f32.xlu0 %v706
        %v708 = vpop.xlane.xlu0 %707
        %v709 = vsub.f32 %v701, %v708
        %v710 = vmul.f32 %v709, 1.442695
        %v711 = vpow.pop %v710
        %v712 = vsel %vm659, %v711, 0.0
        %713 = vadd.xlane.f32.xlu0 %v712
        %v714 = vpop.xlane.xlu0 %713
        %v715 = vrcp.pop %v714
        %v716 = vmul.f32 %v711, %v715
        %v717 = vpack.c.bf16 %v716, %v716
        %719 = vrot.lane.b32.xlu0 %v658, 96
        %v720 = vpop.permute.xlu0 %719
        %v722 = vsel %vm659, %v717, 0
        %vm724 = vcmask 1043456
        %v726 = vsel %vm724, %v720, 0
        %728 = vmatprep.subr.bf16.mxu0 0
        %729 = vmatpush1.bf16.msra.mxu0 %v726
        %730 = vmatprep.subr.bf16.mxu0 0
        %731 = vmatpush1.bf16.msra.mxu0 0
        %732 = vmatprep.subr.bf16.mxu0 0
        %733 = vmatpush1.bf16.msra.mxu0 0
        %734 = vmatprep.subr.bf16.mxu0 0
        %735 = vmatpush1.bf16.msra.mxu0 0
        %736 = vmatprep.subr.bf16.mxu0 0
        %737 = vmatpush1.bf16.msra.mxu0 0
        %738 = vmatprep.subr.bf16.mxu0 0
        %739 = vmatpush1.bf16.msra.mxu0 0
        %740 = vmatprep.subr.bf16.mxu0 0
        %741 = vmatpush1.bf16.msra.mxu0 0
        %742 = vmatprep.subr.bf16.mxu0 0
        %743 = vmatpush1.bf16.msra.mxu0 0
        %744 = vmatprep.subr.bf16.mxu0 0
        %745 = vmatpush1.bf16.msra.mxu0 0
        %746 = vmatprep.subr.bf16.mxu0 0
        %747 = vmatpush1.bf16.msra.mxu0 0
        %748 = vmatprep.subr.bf16.mxu0 0
        %749 = vmatpush1.bf16.msra.mxu0 0
        %750 = vmatprep.subr.bf16.mxu0 0
        %751 = vmatpush1.bf16.msra.mxu0 0
        %752 = vmatprep.subr.bf16.mxu0 0
        %753 = vmatpush1.bf16.msra.mxu0 0
        %754 = vmatprep.subr.bf16.mxu0 0
        %755 = vmatpush1.bf16.msra.mxu0 0
        %756 = vmatprep.subr.bf16.mxu0 0
        %757 = vmatpush1.bf16.msra.mxu0 0
        %758 = vmatprep.subr.bf16.mxu0 0
        %759 = vmatpush1.bf16.msra.mxu0 0
        %760 = vmatprep.mubr.bf16.mxu0 0
        %761 = vmatmul.mubr.bf16.gmra.mrb[0].mxu0 %v722
        %v762 = vpop.f32.mrb[0].mxu0
        %v763 = vadd.f32 0.0, %v762
        %v764 = vpop.f32.mrb[0].mxu0
        %v765 = vpop.f32.mrb[0].mxu0
        %v766 = vpop.f32.mrb[0].mxu0
        %767 = vdwg.mxu0
        %769 = vrot.lane.b32.xlu0 %v657, 120
        %v770 = vpop.permute.xlu0 %769
        %771 = vrot.lane.b32.xlu0 %v658, 120
        %v772 = vpop.permute.xlu0 %771
        %v774 = vsel %vm659, %v770, 0
        %v777 = vsel %vm659, %v772, 0
        %779 = vmatprep.subr.bf16.mxu0 0
        %780 = vmatpush1.bf16.xpose.msra.mxu0 %v777
        %781 = vmatprep.subr.bf16.mxu0 0
        %782 = vmatpush1.bf16.xpose.msra.mxu0 0
        %783 = vmatprep.subr.bf16.mxu0 0
        %784 = vmatpush1.bf16.xpose.msra.mxu0 0
        %785 = vmatprep.subr.bf16.mxu0 0
        %786 = vmatpush1.bf16.xpose.msra.mxu0 0
        %787 = vmatprep.subr.bf16.mxu0 0
        %788 = vmatpush1.bf16.xpose.msra.mxu0 0
        %789 = vmatprep.subr.bf16.mxu0 0
        %790 = vmatpush1.bf16.xpose.msra.mxu0 0
        %791 = vmatprep.subr.bf16.mxu0 0
        %792 = vmatpush1.bf16.xpose.msra.mxu0 0
        %793 = vmatprep.subr.bf16.mxu0 0
        %794 = vmatpush1.bf16.xpose.msra.mxu0 0
        %795 = vmatprep.subr.bf16.mxu0 0
        %796 = vmatpush1.bf16.xpose.msra.mxu0 0
        %797 = vmatprep.subr.bf16.mxu0 0
        %798 = vmatpush1.bf16.xpose.msra.mxu0 0
        %799 = vmatprep.subr.bf16.mxu0 0
        %800 = vmatpush1.bf16.xpose.msra.mxu0 0
        %801 = vmatprep.subr.bf16.mxu0 0
        %802 = vmatpush1.bf16.xpose.msra.mxu0 0
        %803 = vmatprep.subr.bf16.mxu0 0
        %804 = vmatpush1.bf16.xpose.msra.mxu0 0
        %805 = vmatprep.subr.bf16.mxu0 0
        %806 = vmatpush1.bf16.xpose.msra.mxu0 0
        %807 = vmatprep.subr.bf16.mxu0 0
        %808 = vmatpush1.bf16.xpose.msra.mxu0 0
        %809 = vmatprep.subr.bf16.mxu0 0
        %810 = vmatpush1.bf16.xpose.msra.mxu0 0
        %811 = vmatprep.mubr.bf16.mxu0 0
        %812 = vmatmul.mubr.bf16.gmra.mrb[0].mxu0 %v774
        %v813 = vpop.f32.mrb[0].mxu0
        %v814 = vadd.f32 %v655, %v813
        %v815 = vpop.f32.mrb[0].mxu0
        %v816 = vpop.f32.mrb[0].mxu0
        %v817 = vpop.f32.mrb[0].mxu0
        %818 = vdwg.mxu0
        %v819 = vsel %vm659, %v814, -inf
        %820 = vmax.xlane.f32.xlu0 %v819
        %v821 = vpop.xlane.xlu0 %820
        %v822 = vsub.f32 %v814, %v821
        %v823 = vmul.f32 %v822, 1.442695
        %v824 = vpow.pop %v823
        %v825 = vsel %vm659, %v824, 0.0
        %826 = vadd.xlane.f32.xlu0 %v825
        %v827 = vpop.xlane.xlu0 %826
        %v828 = vrcp.pop %v827
        %v829 = vmul.f32 %v824, %v828
        %v830 = vpack.c.bf16 %v829, %v829
        %831 = vrot.lane.b32.xlu0 %v658, 88
        %v832 = vpop.permute.xlu0 %831
        %v834 = vsel %vm659, %v830, 0
        %v837 = vsel %vm724, %v832, 0
        %839 = vmatprep.subr.bf16.mxu0 0
        %840 = vmatpush1.bf16.msra.mxu0 %v837
        %841 = vmatprep.subr.bf16.mxu0 0
        %842 = vmatpush1.bf16.msra.mxu0 0
        %843 = vmatprep.subr.bf16.mxu0 0
        %844 = vmatpush1.bf16.msra.mxu0 0
        %845 = vmatprep.subr.bf16.mxu0 0
        %846 = vmatpush1.bf16.msra.mxu0 0
        %847 = vmatprep.subr.bf16.mxu0 0
        %848 = vmatpush1.bf16.msra.mxu0 0
        %849 = vmatprep.subr.bf16.mxu0 0
        %850 = vmatpush1.bf16.msra.mxu0 0
        %851 = vmatprep.subr.bf16.mxu0 0
        %852 = vmatpush1.bf16.msra.mxu0 0
        %853 = vmatprep.subr.bf16.mxu0 0
        %854 = vmatpush1.bf16.msra.mxu0 0
        %855 = vmatprep.subr.bf16.mxu0 0
        %856 = vmatpush1.bf16.msra.mxu0 0
        %857 = vmatprep.subr.bf16.mxu0 0
        %858 = vmatpush1.bf16.msra.mxu0 0
        %859 = vmatprep.subr.bf16.mxu0 0
        %860 = vmatpush1.bf16.msra.mxu0 0
        %861 = vmatprep.subr.bf16.mxu0 0
        %862 = vmatpush1.bf16.msra.mxu0 0
        %863 = vmatprep.subr.bf16.mxu0 0
        %864 = vmatpush1.bf16.msra.mxu0 0
        %865 = vmatprep.subr.bf16.mxu0 0
        %866 = vmatpush1.bf16.msra.mxu0 0
        %867 = vmatprep.subr.bf16.mxu0 0
        %868 = vmatpush1.bf16.msra.mxu0 0
        %869 = vmatprep.subr.bf16.mxu0 0
        %870 = vmatpush1.bf16.msra.mxu0 0
        %871 = vmatprep.mubr.bf16.mxu0 0
        %872 = vmatmul.mubr.bf16.gmra.mrb[0].mxu0 %v834
        %v873 = vpop.f32.mrb[0].mxu0
        %v874 = vadd.f32 0.0, %v873
        %v875 = vpop.f32.mrb[0].mxu0
        %v876 = vpop.f32.mrb[0].mxu0
        %v877 = vpop.f32.mrb[0].mxu0
        %878 = vdwg.mxu0
        %879 = vrot.lane.b32.xlu0 %v657, 112
        %v880 = vpop.permute.xlu0 %879
        %881 = vrot.lane.b32.xlu0 %v658, 112
        %v882 = vpop.permute.xlu0 %881
        %v884 = vsel %vm659, %v880, 0
        %v887 = vsel %vm659, %v882, 0
        %889 = vmatprep.subr.bf16.mxu0 0
        %890 = vmatpush1.bf16.xpose.msra.mxu0 %v887
        %891 = vmatprep.subr.bf16.mxu0 0
        %892 = vmatpush1.bf16.xpose.msra.mxu0 0
        %893 = vmatprep.subr.bf16.mxu0 0
        %894 = vmatpush1.bf16.xpose.msra.mxu0 0
        %895 = vmatprep.subr.bf16.mxu0 0
        %896 = vmatpush1.bf16.xpose.msra.mxu0 0
        %897 = vmatprep.subr.bf16.mxu0 0
        %898 = vmatpush1.bf16.xpose.msra.mxu0 0
        %899 = vmatprep.subr.bf16.mxu0 0
        %900 = vmatpush1.bf16.xpose.msra.mxu0 0
        %901 = vmatprep.subr.bf16.mxu0 0
        %902 = vmatpush1.bf16.xpose.msra.mxu0 0
        %903 = vmatprep.subr.bf16.mxu0 0
        %904 = vmatpush1.bf16.xpose.msra.mxu0 0
        %905 = vmatprep.subr.bf16.mxu0 0
        %906 = vmatpush1.bf16.xpose.msra.mxu0 0
        %907 = vmatprep.subr.bf16.mxu0 0
        %908 = vmatpush1.bf16.xpose.msra.mxu0 0
        %909 = vmatprep.subr.bf16.mxu0 0
        %910 = vmatpush1.bf16.xpose.msra.mxu0 0
        %911 = vmatprep.subr.bf16.mxu0 0
        %912 = vmatpush1.bf16.xpose.msra.mxu0 0
        %913 = vmatprep.subr.bf16.mxu0 0
        %914 = vmatpush1.bf16.xpose.msra.mxu0 0
        %915 = vmatprep.subr.bf16.mxu0 0
        %916 = vmatpush1.bf16.xpose.msra.mxu0 0
        %917 = vmatprep.subr.bf16.mxu0 0
        %918 = vmatpush1.bf16.xpose.msra.mxu0 0
        %919 = vmatprep.subr.bf16.mxu0 0
        %920 = vmatpush1.bf16.xpose.msra.mxu0 0
        %921 = vmatprep.mubr.bf16.mxu0 0
        %922 = vmatmul.mubr.bf16.gmra.mrb[0].mxu0 %v884
        %v923 = vpop.f32.mrb[0].mxu0
        %v924 = vadd.f32 %v655, %v923
        %v925 = vpop.f32.mrb[0].mxu0
        %v926 = vpop.f32.mrb[0].mxu0
        %v927 = vpop.f32.mrb[0].mxu0
        %928 = vdwg.mxu0
        %v929 = vsel %vm659, %v924, -inf
        %930 = vmax.xlane.f32.xlu0 %v929
        %v931 = vpop.xlane.xlu0 %930
        %v932 = vsub.f32 %v924, %v931
        %v933 = vmul.f32 %v932, 1.442695
        %v934 = vpow.pop %v933
        %v935 = vsel %vm659, %v934, 0.0
        %936 = vadd.xlane.f32.xlu0 %v935
        %v937 = vpop.xlane.xlu0 %936
        %v938 = vrcp.pop %v937
        %v939 = vmul.f32 %v934, %v938
        %v940 = vpack.c.bf16 %v939, %v939
        %941 = vrot.lane.b32.xlu0 %v658, 80
        %v942 = vpop.permute.xlu0 %941
        %v944 = vsel %vm659, %v940, 0
        %v947 = vsel %vm724, %v942, 0
        %949 = vmatprep.subr.bf16.mxu0 0
        %950 = vmatpush1.bf16.msra.mxu0 %v947
        %951 = vmatprep.subr.bf16.mxu0 0
        %952 = vmatpush1.bf16.msra.mxu0 0
        %953 = vmatprep.subr.bf16.mxu0 0
        %954 = vmatpush1.bf16.msra.mxu0 0
        %955 = vmatprep.subr.bf16.mxu0 0
        %956 = vmatpush1.bf16.msra.mxu0 0
        %957 = vmatprep.subr.bf16.mxu0 0
        %958 = vmatpush1.bf16.msra.mxu0 0
        %959 = vmatprep.subr.bf16.mxu0 0
        %960 = vmatpush1.bf16.msra.mxu0 0
        %961 = vmatprep.subr.bf16.mxu0 0
        %962 = vmatpush1.bf16.msra.mxu0 0
        %963 = vmatprep.subr.bf16.mxu0 0
        %964 = vmatpush1.bf16.msra.mxu0 0
        %965 = vmatprep.subr.bf16.mxu0 0
        %966 = vmatpush1.bf16.msra.mxu0 0
        %967 = vmatprep.subr.bf16.mxu0 0
        %968 = vmatpush1.bf16.msra.mxu0 0
        %969 = vmatprep.subr.bf16.mxu0 0
        %970 = vmatpush1.bf16.msra.mxu0 0
        %971 = vmatprep.subr.bf16.mxu0 0
        %972 = vmatpush1.bf16.msra.mxu0 0
        %973 = vmatprep.subr.bf16.mxu0 0
        %974 = vmatpush1.bf16.msra.mxu0 0
        %975 = vmatprep.subr.bf16.mxu0 0
        %976 = vmatpush1.bf16.msra.mxu0 0
        %977 = vmatprep.subr.bf16.mxu0 0
        %978 = vmatpush1.bf16.msra.mxu0 0
        %979 = vmatprep.subr.bf16.mxu0 0
        %980 = vmatpush1.bf16.msra.mxu0 0
        %981 = vmatprep.mubr.bf16.mxu0 0
        %982 = vmatmul.mubr.bf16.gmra.mrb[0].mxu0 %v944
        %v983 = vpop.f32.mrb[0].mxu0
        %v984 = vadd.f32 0.0, %v983
        %v985 = vpop.f32.mrb[0].mxu0
        %v986 = vpop.f32.mrb[0].mxu0
        %v987 = vpop.f32.mrb[0].mxu0
        %988 = vdwg.mxu0
        %989 = vrot.lane.b32.xlu0 %v657, 104
        %v990 = vpop.permute.xlu0 %989
        %991 = vrot.lane.b32.xlu0 %v658, 104
        %v992 = vpop.permute.xlu0 %991
        %v994 = vsel %vm659, %v990, 0
        %v997 = vsel %vm659, %v992, 0
        %999 = vmatprep.subr.bf16.mxu0 0
        %1000 = vmatpush1.bf16.xpose.msra.mxu0 %v997
        %1001 = vmatprep.subr.bf16.mxu0 0
        %1002 = vmatpush1.bf16.xpose.msra.mxu0 0
        %1003 = vmatprep.subr.bf16.mxu0 0
        %1004 = vmatpush1.bf16.xpose.msra.mxu0 0
        %1005 = vmatprep.subr.bf16.mxu0 0
        %1006 = vmatpush1.bf16.xpose.msra.mxu0 0
        %1007 = vmatprep.subr.bf16.mxu0 0
        %1008 = vmatpush1.bf16.xpose.msra.mxu0 0
        %1009 = vmatprep.subr.bf16.mxu0 0
        %1010 = vmatpush1.bf16.xpose.msra.mxu0 0
        %1011 = vmatprep.subr.bf16.mxu0 0
        %1012 = vmatpush1.bf16.xpose.msra.mxu0 0
        %1013 = vmatprep.subr.bf16.mxu0 0
        %1014 = vmatpush1.bf16.xpose.msra.mxu0 0
        %1015 = vmatprep.subr.bf16.mxu0 0
        %1016 = vmatpush1.bf16.xpose.msra.mxu0 0
        %1017 = vmatprep.subr.bf16.mxu0 0
        %1018 = vmatpush1.bf16.xpose.msra.mxu0 0
        %1019 = vmatprep.subr.bf16.mxu0 0
        %1020 = vmatpush1.bf16.xpose.msra.mxu0 0
        %1021 = vmatprep.subr.bf16.mxu0 0
        %1022 = vmatpush1.bf16.xpose.msra.mxu0 0
        %1023 = vmatprep.subr.bf16.mxu0 0
        %1024 = vmatpush1.bf16.xpose.msra.mxu0 0
        %1025 = vmatprep.subr.bf16.mxu0 0
        %1026 = vmatpush1.bf16.xpose.msra.mxu0 0
        %1027 = vmatprep.subr.bf16.mxu0 0
        %1028 = vmatpush1.bf16.xpose.msra.mxu0 0
        %1029 = vmatprep.subr.bf16.mxu0 0
        %1030 = vmatpush1.bf16.xpose.msra.mxu0 0
        %1031 = vmatprep.mubr.bf16.mxu0 0
        %1032 = vmatmul.mubr.bf16.gmra.mrb[0].mxu0 %v994
        %v1033 = vpop.f32.mrb[0].mxu0
        %v1034 = vadd.f32 %v655, %v1033
        %v1035 = vpop.f32.mrb[0].mxu0
        %v1036 = vpop.f32.mrb[0].mxu0
        %v1037 = vpop.f32.mrb[0].mxu0
        %1038 = vdwg.mxu0
        %v1039 = vsel %vm659, %v1034, -inf
        %1040 = vmax.xlane.f32.xlu0 %v1039
        %v1041 = vpop.xlane.xlu0 %1040
        %v1042 = vsub.f32 %v1034, %v1041
        %v1043 = vmul.f32 %v1042, 1.442695
        %v1044 = vpow.pop %v1043
        %v1045 = vsel %vm659, %v1044, 0.0
        %1046 = vadd.xlane.f32.xlu0 %v1045
        %v1047 = vpop.xlane.xlu0 %1046
        %v1048 = vrcp.pop %v1047
        %v1049 = vmul.f32 %v1044, %v1048
        %v1050 = vpack.c.bf16 %v1049, %v1049
        %1051 = vrot.lane.b32.xlu0 %v658, 72
        %v1052 = vpop.permute.xlu0 %1051
        %v1054 = vsel %vm659, %v1050, 0
        %v1057 = vsel %vm724, %v1052, 0
        %1059 = vmatprep.subr.bf16.mxu0 0
        %1060 = vmatpush1.bf16.msra.mxu0 %v1057
        %1061 = vmatprep.subr.bf16.mxu0 0
        %1062 = vmatpush1.bf16.msra.mxu0 0
        %1063 = vmatprep.subr.bf16.mxu0 0
        %1064 = vmatpush1.bf16.msra.mxu0 0
        %1065 = vmatprep.subr.bf16.mxu0 0
        %1066 = vmatpush1.bf16.msra.mxu0 0
        %1067 = vmatprep.subr.bf16.mxu0 0
        %1068 = vmatpush1.bf16.msra.mxu0 0
        %1069 = vmatprep.subr.bf16.mxu0 0
        %1070 = vmatpush1.bf16.msra.mxu0 0
        %1071 = vmatprep.subr.bf16.mxu0 0
        %1072 = vmatpush1.bf16.msra.mxu0 0
        %1073 = vmatprep.subr.bf16.mxu0 0
        %1074 = vmatpush1.bf16.msra.mxu0 0
        %1075 = vmatprep.subr.bf16.mxu0 0
        %1076 = vmatpush1.bf16.msra.mxu0 0
        %1077 = vmatprep.subr.bf16.mxu0 0
        %1078 = vmatpush1.bf16.msra.mxu0 0
        %1079 = vmatprep.subr.bf16.mxu0 0
        %1080 = vmatpush1.bf16.msra.mxu0 0
        %1081 = vmatprep.subr.bf16.mxu0 0
        %1082 = vmatpush1.bf16.msra.mxu0 0
        %1083 = vmatprep.subr.bf16.mxu0 0
        %1084 = vmatpush1.bf16.msra.mxu0 0
        %1085 = vmatprep.subr.bf16.mxu0 0
        %1086 = vmatpush1.bf16.msra.mxu0 0
        %1087 = vmatprep.subr.bf16.mxu0 0
        %1088 = vmatpush1.bf16.msra.mxu0 0
        %1089 = vmatprep.subr.bf16.mxu0 0
        %1090 = vmatpush1.bf16.msra.mxu0 0
        %1091 = vmatprep.mubr.bf16.mxu0 0
        %1092 = vmatmul.mubr.bf16.gmra.mrb[0].mxu0 %v1054
        %v1093 = vpop.f32.mrb[0].mxu0
        %v1094 = vadd.f32 0.0, %v1093
        %v1095 = vpop.f32.mrb[0].mxu0
        %v1096 = vpop.f32.mrb[0].mxu0
        %v1097 = vpop.f32.mrb[0].mxu0
        %1098 = vdwg.mxu0
        %1100 = vrot.lane.b32.xlu0 %v874, 8
        %v1101 = vpop.permute.xlu0 %1100
        %1104 = vrot.lane.b32.xlu0 %v984, 16
        %v1105 = vpop.permute.xlu0 %1104
        %1108 = vrot.lane.b32.xlu0 %v1094, 24
        %v1109 = vpop.permute.xlu0 %1108
        %v1111 = vsel %vm659, %v763, %v1101
        %vm1112 = vcmask 130048
        %v1113 = vsel %vm1112, %v1111, %v1105
        %vm1114 = vcmask 195584
        %v1115 = vsel %vm1114, %v1113, %v1109
        %v1116 = vpack.c.bf16 %v1115, %v1115
        %v1117 = vld [vmem:[#allocation10] sm:$0xf]
        %v1118 = vld [vmem:[#allocation10 + $0x4] sm:$0xf]
        %v1119 = vld [vmem:[#allocation10 + $0x8] sm:$0xf]
        %v1120 = vld [vmem:[#allocation10 + $0xc] sm:$0xf]
        %v1121 = vld [vmem:[%s8] sm:$0x1]
        %v1123 = vlaneseq
        %v1124 = vshrl.u32 %v1123, 7
        %v1125 = vsub.s32 0, %v1124
        %v1126 = vrot.slane %v1121, %v1125
        %v1132 = vunpack.c.l.b16 %v1117
        %v1133 = vunpack.c.l.b16 %v1118
        %v1134 = vunpack.c.l.b16 %v1119
        %v1135 = vunpack.c.l.b16 %v1120
        %v1136 = vpack.c.b16 %v1133, %v1132
        %v1137 = vpack.c.b16 %v1135, %v1134
        %v1141 = vsel %vm539, %v1116, 0
        %1143 = vmatprep.subr.bf16.mxu0 0
        %1144 = vmatpush1.bf16.msra.mxu0 %v1136
        %1145 = vmatprep.subr.bf16.mxu0 0
        %1146 = vmatpush1.bf16.msra.mxu0 %v1137
        %1147 = vmatprep.subr.bf16.mxu0 0
        %1148 = vmatpush1.bf16.msra.mxu0 0
        %1149 = vmatprep.subr.bf16.mxu0 0
        %1150 = vmatpush1.bf16.msra.mxu0 0
        %1151 = vmatprep.subr.bf16.mxu0 0
        %1152 = vmatpush1.bf16.msra.mxu0 0
        %1153 = vmatprep.subr.bf16.mxu0 0
        %1154 = vmatpush1.bf16.msra.mxu0 0
        %1155 = vmatprep.subr.bf16.mxu0 0
        %1156 = vmatpush1.bf16.msra.mxu0 0
        %1157 = vmatprep.subr.bf16.mxu0 0
        %1158 = vmatpush1.bf16.msra.mxu0 0
        %1159 = vmatprep.subr.bf16.mxu0 0
        %1160 = vmatpush1.bf16.msra.mxu0 0
        %1161 = vmatprep.subr.bf16.mxu0 0
        %1162 = vmatpush1.bf16.msra.mxu0 0
        %1163 = vmatprep.subr.bf16.mxu0 0
        %1164 = vmatpush1.bf16.msra.mxu0 0
        %1165 = vmatprep.subr.bf16.mxu0 0
        %1166 = vmatpush1.bf16.msra.mxu0 0
        %1167 = vmatprep.subr.bf16.mxu0 0
        %1168 = vmatpush1.bf16.msra.mxu0 0
        %1169 = vmatprep.subr.bf16.mxu0 0
        %1170 = vmatpush1.bf16.msra.mxu0 0
        %1171 = vmatprep.subr.bf16.mxu0 0
        %1172 = vmatpush1.bf16.msra.mxu0 0
        %1173 = vmatprep.subr.bf16.mxu0 0
        %1174 = vmatpush1.bf16.msra.mxu0 0
        %1175 = vmatprep.mubr.bf16.mxu0 0
        %1176 = vmatmul.mubr.bf16.gmra.mrb[0].mxu0 %v1141
        %v1177 = vpop.f32.mrb[0].mxu0
        %v1178 = vadd.f32 %v1126, %v1177
        %v1179 = vpop.f32.mrb[0].mxu0
        %v1180 = vpop.f32.mrb[0].mxu0
        %v1181 = vpop.f32.mrb[0].mxu0
        %1182 = vdwg.mxu0
        %v1183 = vadd.f32 %v1178, %v512
        %v1184 = vsel %vm539, %v1183, 0.0
        %1185 = vadd.xlane.f32.xlu0 %v1184
        %v1186 = vpop.xlane.xlu0 %1185
        %v1187 = vrcp.pop 32.0
        %v1188 = vmul.f32 %v1186, %v1187
        %v1189 = vsub.f32 %v1183, %v1188
        %v1190 = vmul.f32 %v1189, %v1189
        %v1191 = vsel %vm539, %v1190, 0.0
        %1192 = vadd.xlane.f32.xlu0 %v1191
        %v1193 = vpop.xlane.xlu0 %1192
        %v1194 = vmul.f32 %v1193, %v1187
        %v1195 = vadd.f32 %v1194, 1e-12
        %v1196 = vrsqrt.pop %v1195
        %v1197 = vmul.f32 %v1189, %v1196
        %v1198 = vld [vmem:[%s9] sm:$0x1]
        %v1200 = vlaneseq
        %v1201 = vshrl.u32 %v1200, 7
        %v1202 = vsub.s32 0, %v1201
        %v1203 = vrot.slane %v1198, %v1202
        %v1205 = vmul.f32 %v1197, %v1203
        %v1206 = vld [vmem:[%s10] sm:$0x1]
        %v1208 = vlaneseq
        %v1209 = vshrl.u32 %v1208, 7
        %v1210 = vsub.s32 0, %v1209
        %v1211 = vrot.slane %v1206, %v1210
        %v1213 = vadd.f32 %v1205, %v1211
        %1214 = vst.msk [vmem:[%s507] sm:$0xff] %vm539, %v1213
        %s1215 = sand.u32 %s302, 1
        %s1216 = scalar_lea.sflag [#allocation4], %s1215
        %s1217 = sand.u32 %s302, 1
        %s1218 = smul.addr %s1217, 8
        %s1219 = scalar_lea.vmem [#allocation11], %s1218
        // Predicated region
        $region85: #{tpu_custom_call.1} parent=63 // pred_check
          %p1220 = pneg %p312
        $region86: #{tpu_custom_call.1} parent=63 // pred_check_branch
          %1222 = sbr.rel (%p1220) target = $region88
        $region87: #{tpu_custom_call.1} parent=63 // pred_region
          %s1224 = ssub.s32 128, 128
          %1225 = vsyncadd %s1216, %s1224
          %s1226 = sadd.s32 %s37, %s36
          %s1227 = smul.addr %s1226, 128
          %s1228 = scalar_lea.hbm %s11, %s1227
          %s1230 = sshll.u32 %s1219, 4
          %s1231 = int_to_ptr.vmem [resolvable:$true] %s1230
          %1233 = dma.vmem_to_hbm [thread:$0]  %s1231, 128, %s1228, %s1216
        $region88: #{tpu_custom_call.1} parent=63 // pred_fallthru
          _
      $region64: #{tpu_custom_call.1} parent=5 // pred_fallthru
        _
      %p1234 = scmp.le.s32.totalorder 2, %s27
      // Predicated region
      $region89: #{tpu_custom_call.1} parent=5 // pred_check
        %p1235 = pneg %p1234
      $region90: #{tpu_custom_call.1} parent=5 // pred_check_branch
        %1237 = sbr.rel (%p1235) target = $region92
      $region91: #{tpu_custom_call.1} parent=5 // pred_region
        %s1238 = ssub.s32 %s27, 2
        // Predicated region
        $region93: #{tpu_custom_call.1} parent=91 // pred_check
          %p1239 = pneg %p318
        $region94: #{tpu_custom_call.1} parent=91 // pred_check_branch
          %1241 = sbr.rel (%p1239) target = $region96
        $region95: #{tpu_custom_call.1} parent=91 // pred_region
          %s1242 = sand.u32 %s303, 1
          %s1243 = scalar_lea.sflag [#allocation4], %s1242
          %s1244 = sand.u32 %s303, 1
          %s1245 = smul.addr %s1244, 8
          %s1246 = scalar_lea.vmem [#allocation11], %s1245
          %1247 = dma.done %s1243, 128
        $region96: #{tpu_custom_call.1} parent=91 // pred_fallthru
          _
      $region92: #{tpu_custom_call.1} parent=5 // pred_fallthru
        _
    $region6: #{tpu_custom_call.1} parent=1 // loop_footer
      %s31 = sadd.s32 1, %s27
    $region7: #{tpu_custom_call.1} parent=1 // loop_footer_branch
      %26 = sbr.rel target = $region3
    $region8: #{tpu_custom_call.1} parent=1 // loop_exit
      _
    %1248 = vsyncpa [#allocation3], 1
    %s1249 = scalar_lea.sflag [#allocation3], 1
    %1250 = vsyncpa %s1249, 1
    %1251 = vsyncpa [#allocation6], 1
    %s1252 = scalar_lea.sflag [#allocation6], 1
    %1253 = vsyncpa %s1252, 1
    %1254 = vsyncpa [#allocation9], 1
    %1255 = vsyncpa [#allocation4], 1
    %s1256 = scalar_lea.sflag [#allocation4], 1
    %1257 = vsyncpa %s1256, 1

</llo_original>
